<compile_context>
chip_gen: v5e
topology: v5e:2x2
jax: 0.10.0
libtpu: 0.0.40
codegen_flags: <defaults>
</compile_context>

<pallas_src>
import math
import functools

import jax
import jax.numpy as jnp
from jax import lax
from jax.experimental import pallas as pl
from jax.experimental.pallas import tpu as pltpu


# ----------------------------------------------------------------------------
# Pallas kernel: all WITRAN encoder heads, full diagonal recurrence, batched
# ----------------------------------------------------------------------------
def _make_witran_kernel(*, H, S_len, s_chunk, N_rb, wit_batch, n_heads,
                        needs_guard, unroll):
    two_h, four_h = 2 * H, 4 * H

    def kernel(xp_ref, wrc_ref, out_ref, state_ref):
        # xp_ref   : (s_chunk, n_heads, N_rb, 6H) precomputed x-proj (+ masked bias)
        # wrc_ref  : (n_heads, 2H, 6H)            fused [W_row; W_col] recurrent weight
        # out_ref  : (n_heads, N_rb, 2H)          final [h_row | h_col] (col pre-roll)
        # state_ref: (n_heads, N_rb, 2H)          state carried across S-chunks
        c = pl.program_id(0)

        @pl.when(c == 0)
        def _init():
            state_ref[...] = jnp.zeros_like(state_ref)

        wrc = wrc_ref[...]                                    # resident across loop
        lane = lax.broadcasted_iota(jnp.int32, (n_heads, N_rb, two_h), 2)
        keep_row = lane < H                                   # row half of fused state

        def step(s, h):
            # one batched MXU issue for all heads; xp already holds x@W_x + bias
            gate = jnp.einsum('hnk,hkg->hng', h, wrc,
                              preferred_element_type=jnp.float32) + xp_ref[s]
            sig = jax.nn.sigmoid(gate[..., :four_h])          # 4H slab (128-lane aligned)
            u = sig[..., :two_h]                              # [u_row | u_col]
            o = sig[..., two_h:]                              # [o_row | o_col]
            i = jnp.tanh(gate[..., four_h:])                  # [i_row | i_col]
            new = jnp.tanh((1.0 - u) * h + u * i) * o         # [new_row | new_col]
            # torch.roll(hidden_slice_col, shifts=wit_batch, dims=0), applied to
            # the col half only via a lane-mask select (row half untouched).
            rolled = jnp.roll(new, wit_batch, axis=1)
            h_next = jnp.where(keep_row, new, rolled)
            if needs_guard:
                valid = (c * s_chunk + s) < S_len             # ignore padded steps
                h_next = jnp.where(valid, h_next, h)
            return h_next

        h_fin = lax.fori_loop(0, s_chunk, step, state_ref[...], unroll=unroll)
        state_ref[...] = h_fin                                # carry across chunks

        @pl.when(c == pl.num_programs(0) - 1)
        def _finalize():
            # Single store: recover the pre-roll column state of the last step
            # by inverting the roll (row half is unaffected by the roll).
            pre = jnp.roll(h_fin, -wit_batch, axis=1)
            out_ref[...] = jnp.where(keep_row, h_fin, pre)

    return kernel


def witran_encode_heads(a, W_all, B_all, *, H, wit_batch, slice_num,
                        s_chunk_max=32):
    """Run all encoder heads in one pallas_call.

    a     : (S_len, N_rb, C)   padded ("water2sea") input, N_rb = slice_num*wit_batch
    W_all : (n_heads, 6H, 2H+C) per-head weight (input order [h_row, h_col, x])
    B_all : (n_heads, num_layers, 6H) per-head bias; only layer 0 used.

    Returns (n_heads, N_rb, 2H): [h_row | h_col] at the end of the last diagonal
    slice (col state taken before the final roll).
    """
    S_len, N_rb, C = a.shape
    n_heads = W_all.shape[0]
    two_h, six_h = 2 * H, 6 * H

    # Gate-column permutation so u / o / i are each contiguous 2H blocks:
    #   original blocks [u_row, o_row, u_col, o_col, i_row, i_col]
    #   new order       [u_row, u_col, o_row, o_col, i_row, i_col]
    perm = jnp.concatenate([jnp.arange(b * H, (b + 1) * H)
                            for b in (0, 2, 1, 3, 4, 5)])

    W_T = jnp.transpose(W_all, (0, 2, 1))[:, :, perm]         # (heads, 2H+C, 6H')
    W_rc = W_T[:, :two_h, :].astype(jnp.float32)              # (heads, 2H, 6H')
    W_x = W_T[:, two_h:, :]                                   # (heads, C, 6H')
    b0 = B_all[:, 0, :][:, perm]                              # (heads, 6H')

    # Hoisted input projection + row/slice-masked bias (torch `linear` helper):
    # bias only when slice < slice_num, and only the first wit_batch*(slice+1) rows.
    s_idx = jnp.arange(S_len)[:, None]
    r_idx = jnp.arange(N_rb)[None, :]
    bias_mask = ((r_idx < wit_batch * (s_idx + 1)) & (s_idx < slice_num))
    bias_mask = bias_mask.astype(jnp.float32)[:, None, :, None]       # (S,1,N_rb,1)
    x_proj = (jnp.einsum('snc,hcg->shng', a, W_x)
              + bias_mask * b0[None, :, None, :]).astype(jnp.float32)
    # TODO(synk): x_proj / W_rc could be stored in bf16 (f32 accumulate) to halve
    # VMEM/DMA on v7x; kept f32 to match the PyTorch f32 reference numerics.

    # Chunk the S axis so VMEM is bounded and the xp DMA pipelines vs. compute.
    s_chunk = S_len if S_len <= s_chunk_max else s_chunk_max
    num_chunks = -(-S_len // s_chunk)
    S_pad = num_chunks * s_chunk
    needs_guard = (S_pad != S_len)
    if needs_guard:
        x_proj = jnp.pad(x_proj, ((0, S_pad - S_len), (0, 0), (0, 0), (0, 0)))
    unroll = True if s_chunk <= 16 else 4

    kernel = _make_witran_kernel(H=H, S_len=S_len, s_chunk=s_chunk, N_rb=N_rb,
                                 wit_batch=wit_batch, n_heads=n_heads,
                                 needs_guard=needs_guard, unroll=unroll)

    out = pl.pallas_call(
        kernel,
        out_shape=jax.ShapeDtypeStruct((n_heads, N_rb, two_h), jnp.float32),
        grid_spec=pltpu.PrefetchScalarGridSpec(
            num_scalar_prefetch=0,
            grid=(num_chunks,),
            in_specs=[
                pl.BlockSpec((s_chunk, n_heads, N_rb, six_h),
                             lambda c: (c, 0, 0, 0)),
                pl.BlockSpec((n_heads, two_h, six_h), lambda c: (0, 0, 0)),
            ],
            out_specs=pl.BlockSpec((n_heads, N_rb, two_h), lambda c: (0, 0, 0)),
            scratch_shapes=[pltpu.VMEM((n_heads, N_rb, two_h), jnp.float32)],
        ),
        compiler_params=pltpu.CompilerParams(
            dimension_semantics=("arbitrary",)),
    )(x_proj, W_rc)
    return out


# ----------------------------------------------------------------------------
# Plain-JAX glue (water2sea padding, tiny output heads)
# ----------------------------------------------------------------------------
def build_water2sea_input(xw):
    """xw: (wit_batch, row, col, C) -> (S_len, slice_num*wit_batch, C).

    Matches the flag==1 path: permute(2,0,1,3), then diagonal-shifted padding,
    built with pad + per-slice roll (no serial dynamic-update-slice chain).
    """
    inp = jnp.transpose(xw, (2, 0, 1, 3))                     # (col, wb, row, C)
    slice_num, wb, orig_len, C = inp.shape
    S_len = slice_num + orig_len - 1
    padded = jnp.pad(inp, ((0, 0), (0, 0), (0, slice_num - 1), (0, 0)))
    it = jnp.stack([jnp.roll(padded[r], r, axis=1) for r in range(slice_num)],
                   axis=0)                                    # (col, wb, S_len, C)
    a = it.reshape(slice_num * wb, S_len, C)
    return jnp.transpose(a, (1, 0, 2))                        # (S_len, N_rb, C)


def pn_witran_forward(x, params, cfg):
    """Eval-mode forward with signal=None (the y_pred path)."""
    B, N, L, C = x.shape
    row, col = cfg['row'], cfg['col']
    H, T = cfg['hidden_size'], cfg['threshold_num']
    assert row * col == L and row >= col
    assert cfg['num_layers'] == 1
    # TODO(synk): B > 1 hits the same `y_pred[..., i] = output` broadcast quirk
    # as the PyTorch reference; only B == 1 is supported, like the original.

    xw = x.reshape(-1, row, col, C)                           # (B*N, row, col, C)
    wit_batch = xw.shape[0]
    slice_num = col                                           # flag == 1
    a = build_water2sea_input(xw)                             # (S_len, N_rb, C)

    # One fused pallas_call over all T+2 encoder heads:
    #   head 0     -> classifier encoder
    #   head i + 1 -> regressor i encoder
    W_all = jnp.concatenate([params['class_W'][None], params['wit_W']], axis=0)
    B_all = jnp.concatenate([params['class_B'][None], params['wit_B']], axis=0)

    hfin = witran_encode_heads(a, W_all, B_all,
                               H=H, wit_batch=wit_batch, slice_num=slice_num)
    lo = (slice_num - 1) * wit_batch
    sel = hfin[:, lo:lo + wit_batch, :]                       # (heads, B*N, 2H)
    hrow_sel = sel[..., :H]                                   # hidden_row_all[...,-1,-1,:]
    hcol_sel = sel[..., H:]                                   # hidden_col_all[...,-1,-1,:]
    # reference: `_, row, col = encoder(...)` -> row_var=hidden_col, col_var=hidden_row
    row_var, col_var = hcol_sel, hrow_sel                     # each (heads, B*N, H)

    # ---- classifier head (head 0) ----
    feat = jnp.concatenate([row_var[0], col_var[0]], axis=-1)       # (B*N, 2H)
    class_pred = feat @ params['class_out_w'].T + params['class_out_b']
    class_pred = class_pred.reshape(B, N, T + 1)
    softmax_out = jax.nn.softmax(class_pred, axis=-1)

    # ---- per-class regressors (heads 1..T+1), batched over heads ----
    r_reg = row_var[1:]                                       # (T+1, B*N, H)
    c_reg = col_var[1:]
    out1 = jnp.einsum('tbh,toh->tbo', r_reg, params['fc1_w']) \
        + params['fc1_b'][:, None, :]
    out2 = jnp.einsum('tbh,toh->tbo', c_reg, params['fc2_w']) \
        + params['fc2_b'][:, None, :]
    y_pred = (0.5 * out1 + 0.5 * out2)[..., 0]                # (T+1, B*N)
    y_pred = jnp.transpose(y_pred).reshape(B, N, T + 1)

    y = jnp.sum(softmax_out * y_pred, axis=-1)                # (B, N)
    return y.reshape(B, N)


# ----------------------------------------------------------------------------
# Deterministic parameter init (shapes per the module __init__)
# ----------------------------------------------------------------------------
def init_params(key, cfg):
    C, H, T = cfg['C'], cfg['hidden_size'], cfg['threshold_num']
    nl = cfg['num_layers']
    stdv = 1.0 / math.sqrt(H)
    s2h = 1.0 / math.sqrt(2 * H)
    sh = 1.0 / math.sqrt(H)

    keys = iter(jax.random.split(key, 10))

    def u(shape, scale):
        return jax.random.uniform(next(keys), shape, jnp.float32, -scale, scale)

    params = {
        'class_W': u((6 * H, 2 * H + C), stdv),       # W_first_layer (classifier)
        'class_B': u((nl, 6 * H), stdv),
        'class_out_w': u((T + 1, 2 * H), s2h),        # nn.Linear(2H, T+1)
        'class_out_b': u((T + 1,), s2h),
        'wit_W': u((T + 1, 6 * H, 2 * H + C), stdv),  # per-regressor encoders
        'wit_B': u((T + 1, nl, 6 * H), stdv),
        'fc1_w': u((T + 1, 1, H), sh),                # nn.Linear(H, 1) per class
        'fc1_b': u((T + 1, 1), sh),
        'fc2_w': u((T + 1, 1, H), sh),
        'fc2_b': u((T + 1, 1), sh),
    }
    # TODO(synk): self.fc1 = nn.Linear(L*C, T+1) is defined but never used in
    # the reference forward; not materialized here.
    return params


# ----------------------------------------------------------------------------
if __name__ == "__main__":
    cfg = dict(
        C=4, L=8, hidden_size=32, row=4, col=2,
        type='none', dropout=0.0, num_layers=1, threshold_num=3,
    )
    # B=1 so that the reference's `y_pred[..., i] = output` broadcast is
    # well-defined (it only works for B==1 in PyTorch).
    B, N = 1, 4
    key = jax.random.PRNGKey(0)
    kx, kp = jax.random.split(key)
    x = jax.random.normal(kx, (B, N, cfg['L'], cfg['C']), jnp.float32)
    params = init_params(kp, cfg)

    fwd = jax.jit(functools.partial(pn_witran_forward, cfg=cfg))
    y = fwd(x, params)
    jax.block_until_ready(y)
    assert y.shape == (B, N)
    print("KERNEL_OK")
</pallas_src>

<mosaic_0001>
module attributes {stable_mosaic.version = 11 : i64} {
  func.func @kernel(%arg0: i32, %arg1: memref<5x5x8x192xf32, #tpu.memory_space<vmem>>, %arg2: memref<5x64x192xf32, #tpu.memory_space<vmem>>, %arg3: memref<5x8x64xf32, #tpu.memory_space<vmem>>, %arg4: memref<5x8x64xf32, #tpu.memory_space<vmem>>) attributes {dimension_semantics = [#tpu.dimension_semantics<arbitrary>], iteration_bounds = array<i64: 1>, scalar_prefetch = 0 : i64, scratch_operands = 1 : i64, tpu.core_type = #tpu.core_type<tc>, window_params = [{transform_indices = @transform_0, window_bounds = array<i64: 5, 5, 8, 192>}, {pipeline_mode = #tpu.pipeline_mode<synchronous>, transform_indices = @transform_1, window_bounds = array<i64: 5, 64, 192>}, {pipeline_mode = #tpu.pipeline_mode<synchronous>, transform_indices = @transform_2, window_bounds = array<i64: 5, 8, 64>}]} {
    %c0_i32 = arith.constant 0 : i32
    %0 = arith.cmpi eq, %arg0, %c0_i32 : i32
    %1 = arith.extui %0 : i1 to i32
    %c0_i32_0 = arith.constant 0 : i32
    %2 = arith.cmpi ne, %1, %c0_i32_0 : i32
    scf.if %2 {
      %cst_41 = arith.constant 0.000000e+00 : f32
      %142 = vector.broadcast %cst_41 : f32 to vector<5x8x64xf32>
      %c0_42 = arith.constant 0 : index
      %c0_43 = arith.constant 0 : index
      %c0_44 = arith.constant 0 : index
      %143 = vector.load %arg4[%c0_42, %c0_43, %c0_44] : memref<5x8x64xf32, #tpu.memory_space<vmem>>, vector<5x8x64xf32>
      tpu.vector_store %arg4[%c0_42, %c0_43, %c0_44], %142 {strides = array<i32>} : memref<5x8x64xf32, #tpu.memory_space<vmem>>, vector<5x8x64xf32>,
    } else {
    }
    %c0 = arith.constant 0 : index
    %c0_1 = arith.constant 0 : index
    %c0_2 = arith.constant 0 : index
    %3 = vector.load %arg2[%c0, %c0_1, %c0_2] : memref<5x64x192xf32, #tpu.memory_space<vmem>>, vector<5x64x192xf32>
    %4 = tpu.iota {dimensions = array<i32: 2>} : vector<5x8x64xi32>
    %c32_i32 = arith.constant 32 : i32
    %5 = vector.broadcast %c32_i32 : i32 to vector<5x8x64xi32>
    %6 = arith.cmpi slt, %4, %5 : vector<5x8x64xi32>
    %c0_3 = arith.constant 0 : index
    %c0_4 = arith.constant 0 : index
    %c0_5 = arith.constant 0 : index
    %7 = vector.load %arg4[%c0_3, %c0_4, %c0_5] : memref<5x8x64xf32, #tpu.memory_space<vmem>>, vector<5x8x64xf32>
    %c0_i32_6 = arith.constant 0 : i32
    "tpu.trace_start"() <{level = 10 : i32, message = "hnk,hkg->hng"}> : () -> ()
    %cst = arith.constant dense<0.000000e+00> : vector<5x8x192xf32>
    %8 = tpu.matmul %7, %3, %cst {dimension_numbers = #tpu.dot_dimension_numbers<[2], [1], [1], [2], [0, 0, 0, 1, 1, 2], [0], [0]>} : vector<5x8x64xf32>, vector<5x64x192xf32>, vector<5x8x192xf32> -> vector<5x8x192xf32>
    "tpu.trace_stop"() : () -> ()
    %9 = arith.index_cast %c0_i32_6 : i32 to index
    %c0_7 = arith.constant 0 : index
    %c0_8 = arith.constant 0 : index
    %c0_9 = arith.constant 0 : index
    %10 = vector.load %arg1[%9, %c0_7, %c0_8, %c0_9] : memref<5x5x8x192xf32, #tpu.memory_space<vmem>>, vector<1x5x8x192xf32>
    %11 = vector.shape_cast %10 : vector<1x5x8x192xf32> to vector<5x8x192xf32>
    %12 = arith.addf %8, %11 : vector<5x8x192xf32>
    %13 = vector.extract_strided_slice %12 {offsets = [0, 0, 0], sizes = [5, 8, 128], strides = [1, 1, 1]} : vector<5x8x192xf32> to vector<5x8x128xf32>
    %14 = arith.negf %13 : vector<5x8x128xf32>
    %15 = math.exp %14 : vector<5x8x128xf32>
    %cst_10 = arith.constant 1.000000e+00 : f32
    %16 = vector.broadcast %cst_10 : f32 to vector<5x8x128xf32>
    %17 = arith.addf %16, %15 : vector<5x8x128xf32>
    %18 = arith.divf %16, %17 : vector<5x8x128xf32>
    %19 = vector.extract_strided_slice %18 {offsets = [0, 0, 0], sizes = [5, 8, 64], strides = [1, 1, 1]} : vector<5x8x128xf32> to vector<5x8x64xf32>
    %20 = vector.extract_strided_slice %18 {offsets = [0, 0, 64], sizes = [5, 8, 64], strides = [1, 1, 1]} : vector<5x8x128xf32> to vector<5x8x64xf32>
    %21 = vector.extract_strided_slice %12 {offsets = [0, 0, 128], sizes = [5, 8, 64], strides = [1, 1, 1]} : vector<5x8x192xf32> to vector<5x8x64xf32>
    %22 = math.tanh %21 : vector<5x8x64xf32>
    %cst_11 = arith.constant 1.000000e+00 : f32
    %23 = vector.broadcast %cst_11 : f32 to vector<5x8x64xf32>
    %24 = arith.subf %23, %19 : vector<5x8x64xf32>
    %25 = arith.mulf %24, %7 : vector<5x8x64xf32>
    %26 = arith.mulf %19, %22 : vector<5x8x64xf32>
    %27 = arith.addf %25, %26 : vector<5x8x64xf32>
    %28 = math.tanh %27 : vector<5x8x64xf32>
    %29 = arith.mulf %28, %20 : vector<5x8x64xf32>
    %30 = vector.extract_strided_slice %29 {offsets = [0, 4, 0], sizes = [5, 4, 64], strides = [1, 1, 1]} : vector<5x8x64xf32> to vector<5x4x64xf32>
    %31 = vector.extract_strided_slice %29 {offsets = [0, 0, 0], sizes = [5, 4, 64], strides = [1, 1, 1]} : vector<5x8x64xf32> to vector<5x4x64xf32>
    %32 = tpu.concatenate %30, %31 in 1 : vector<5x4x64xf32>, vector<5x4x64xf32> -> vector<5x8x64xf32>
    %33 = arith.select %6, %29, %32 : vector<5x8x64xi1>, vector<5x8x64xf32>
    %c1_i32 = arith.constant 1 : i32
    "tpu.trace_start"() <{level = 10 : i32, message = "hnk,hkg->hng"}> : () -> ()
    %cst_12 = arith.constant dense<0.000000e+00> : vector<5x8x192xf32>
    %34 = tpu.matmul %33, %3, %cst_12 {dimension_numbers = #tpu.dot_dimension_numbers<[2], [1], [1], [2], [0, 0, 0, 1, 1, 2], [0], [0]>} : vector<5x8x64xf32>, vector<5x64x192xf32>, vector<5x8x192xf32> -> vector<5x8x192xf32>
    "tpu.trace_stop"() : () -> ()
    %35 = arith.index_cast %c1_i32 : i32 to index
    %c0_13 = arith.constant 0 : index
    %c0_14 = arith.constant 0 : index
    %c0_15 = arith.constant 0 : index
    %36 = vector.load %arg1[%35, %c0_13, %c0_14, %c0_15] : memref<5x5x8x192xf32, #tpu.memory_space<vmem>>, vector<1x5x8x192xf32>
    %37 = vector.shape_cast %36 : vector<1x5x8x192xf32> to vector<5x8x192xf32>
    %38 = arith.addf %34, %37 : vector<5x8x192xf32>
    %39 = vector.extract_strided_slice %38 {offsets = [0, 0, 0], sizes = [5, 8, 128], strides = [1, 1, 1]} : vector<5x8x192xf32> to vector<5x8x128xf32>
    %40 = arith.negf %39 : vector<5x8x128xf32>
    %41 = math.exp %40 : vector<5x8x128xf32>
    %cst_16 = arith.constant 1.000000e+00 : f32
    %42 = vector.broadcast %cst_16 : f32 to vector<5x8x128xf32>
    %43 = arith.addf %42, %41 : vector<5x8x128xf32>
    %44 = arith.divf %42, %43 : vector<5x8x128xf32>
    %45 = vector.extract_strided_slice %44 {offsets = [0, 0, 0], sizes = [5, 8, 64], strides = [1, 1, 1]} : vector<5x8x128xf32> to vector<5x8x64xf32>
    %46 = vector.extract_strided_slice %44 {offsets = [0, 0, 64], sizes = [5, 8, 64], strides = [1, 1, 1]} : vector<5x8x128xf32> to vector<5x8x64xf32>
    %47 = vector.extract_strided_slice %38 {offsets = [0, 0, 128], sizes = [5, 8, 64], strides = [1, 1, 1]} : vector<5x8x192xf32> to vector<5x8x64xf32>
    %48 = math.tanh %47 : vector<5x8x64xf32>
    %cst_17 = arith.constant 1.000000e+00 : f32
    %49 = vector.broadcast %cst_17 : f32 to vector<5x8x64xf32>
    %50 = arith.subf %49, %45 : vector<5x8x64xf32>
    %51 = arith.mulf %50, %33 : vector<5x8x64xf32>
    %52 = arith.mulf %45, %48 : vector<5x8x64xf32>
    %53 = arith.addf %51, %52 : vector<5x8x64xf32>
    %54 = math.tanh %53 : vector<5x8x64xf32>
    %55 = arith.mulf %54, %46 : vector<5x8x64xf32>
    %56 = vector.extract_strided_slice %55 {offsets = [0, 4, 0], sizes = [5, 4, 64], strides = [1, 1, 1]} : vector<5x8x64xf32> to vector<5x4x64xf32>
    %57 = vector.extract_strided_slice %55 {offsets = [0, 0, 0], sizes = [5, 4, 64], strides = [1, 1, 1]} : vector<5x8x64xf32> to vector<5x4x64xf32>
    %58 = tpu.concatenate %56, %57 in 1 : vector<5x4x64xf32>, vector<5x4x64xf32> -> vector<5x8x64xf32>
    %59 = arith.select %6, %55, %58 : vector<5x8x64xi1>, vector<5x8x64xf32>
    %c2_i32 = arith.constant 2 : i32
    "tpu.trace_start"() <{level = 10 : i32, message = "hnk,hkg->hng"}> : () -> ()
    %cst_18 = arith.constant dense<0.000000e+00> : vector<5x8x192xf32>
    %60 = tpu.matmul %59, %3, %cst_18 {dimension_numbers = #tpu.dot_dimension_numbers<[2], [1], [1], [2], [0, 0, 0, 1, 1, 2], [0], [0]>} : vector<5x8x64xf32>, vector<5x64x192xf32>, vector<5x8x192xf32> -> vector<5x8x192xf32>
    "tpu.trace_stop"() : () -> ()
    %61 = arith.index_cast %c2_i32 : i32 to index
    %c0_19 = arith.constant 0 : index
    %c0_20 = arith.constant 0 : index
    %c0_21 = arith.constant 0 : index
    %62 = vector.load %arg1[%61, %c0_19, %c0_20, %c0_21] : memref<5x5x8x192xf32, #tpu.memory_space<vmem>>, vector<1x5x8x192xf32>
    %63 = vector.shape_cast %62 : vector<1x5x8x192xf32> to vector<5x8x192xf32>
    %64 = arith.addf %60, %63 : vector<5x8x192xf32>
    %65 = vector.extract_strided_slice %64 {offsets = [0, 0, 0], sizes = [5, 8, 128], strides = [1, 1, 1]} : vector<5x8x192xf32> to vector<5x8x128xf32>
    %66 = arith.negf %65 : vector<5x8x128xf32>
    %67 = math.exp %66 : vector<5x8x128xf32>
    %cst_22 = arith.constant 1.000000e+00 : f32
    %68 = vector.broadcast %cst_22 : f32 to vector<5x8x128xf32>
    %69 = arith.addf %68, %67 : vector<5x8x128xf32>
    %70 = arith.divf %68, %69 : vector<5x8x128xf32>
    %71 = vector.extract_strided_slice %70 {offsets = [0, 0, 0], sizes = [5, 8, 64], strides = [1, 1, 1]} : vector<5x8x128xf32> to vector<5x8x64xf32>
    %72 = vector.extract_strided_slice %70 {offsets = [0, 0, 64], sizes = [5, 8, 64], strides = [1, 1, 1]} : vector<5x8x128xf32> to vector<5x8x64xf32>
    %73 = vector.extract_strided_slice %64 {offsets = [0, 0, 128], sizes = [5, 8, 64], strides = [1, 1, 1]} : vector<5x8x192xf32> to vector<5x8x64xf32>
    %74 = math.tanh %73 : vector<5x8x64xf32>
    %cst_23 = arith.constant 1.000000e+00 : f32
    %75 = vector.broadcast %cst_23 : f32 to vector<5x8x64xf32>
    %76 = arith.subf %75, %71 : vector<5x8x64xf32>
    %77 = arith.mulf %76, %59 : vector<5x8x64xf32>
    %78 = arith.mulf %71, %74 : vector<5x8x64xf32>
    %79 = arith.addf %77, %78 : vector<5x8x64xf32>
    %80 = math.tanh %79 : vector<5x8x64xf32>
    %81 = arith.mulf %80, %72 : vector<5x8x64xf32>
    %82 = vector.extract_strided_slice %81 {offsets = [0, 4, 0], sizes = [5, 4, 64], strides = [1, 1, 1]} : vector<5x8x64xf32> to vector<5x4x64xf32>
    %83 = vector.extract_strided_slice %81 {offsets = [0, 0, 0], sizes = [5, 4, 64], strides = [1, 1, 1]} : vector<5x8x64xf32> to vector<5x4x64xf32>
    %84 = tpu.concatenate %82, %83 in 1 : vector<5x4x64xf32>, vector<5x4x64xf32> -> vector<5x8x64xf32>
    %85 = arith.select %6, %81, %84 : vector<5x8x64xi1>, vector<5x8x64xf32>
    %c3_i32 = arith.constant 3 : i32
    "tpu.trace_start"() <{level = 10 : i32, message = "hnk,hkg->hng"}> : () -> ()
    %cst_24 = arith.constant dense<0.000000e+00> : vector<5x8x192xf32>
    %86 = tpu.matmul %85, %3, %cst_24 {dimension_numbers = #tpu.dot_dimension_numbers<[2], [1], [1], [2], [0, 0, 0, 1, 1, 2], [0], [0]>} : vector<5x8x64xf32>, vector<5x64x192xf32>, vector<5x8x192xf32> -> vector<5x8x192xf32>
    "tpu.trace_stop"() : () -> ()
    %87 = arith.index_cast %c3_i32 : i32 to index
    %c0_25 = arith.constant 0 : index
    %c0_26 = arith.constant 0 : index
    %c0_27 = arith.constant 0 : index
    %88 = vector.load %arg1[%87, %c0_25, %c0_26, %c0_27] : memref<5x5x8x192xf32, #tpu.memory_space<vmem>>, vector<1x5x8x192xf32>
    %89 = vector.shape_cast %88 : vector<1x5x8x192xf32> to vector<5x8x192xf32>
    %90 = arith.addf %86, %89 : vector<5x8x192xf32>
    %91 = vector.extract_strided_slice %90 {offsets = [0, 0, 0], sizes = [5, 8, 128], strides = [1, 1, 1]} : vector<5x8x192xf32> to vector<5x8x128xf32>
    %92 = arith.negf %91 : vector<5x8x128xf32>
    %93 = math.exp %92 : vector<5x8x128xf32>
    %cst_28 = arith.constant 1.000000e+00 : f32
    %94 = vector.broadcast %cst_28 : f32 to vector<5x8x128xf32>
    %95 = arith.addf %94, %93 : vector<5x8x128xf32>
    %96 = arith.divf %94, %95 : vector<5x8x128xf32>
    %97 = vector.extract_strided_slice %96 {offsets = [0, 0, 0], sizes = [5, 8, 64], strides = [1, 1, 1]} : vector<5x8x128xf32> to vector<5x8x64xf32>
    %98 = vector.extract_strided_slice %96 {offsets = [0, 0, 64], sizes = [5, 8, 64], strides = [1, 1, 1]} : vector<5x8x128xf32> to vector<5x8x64xf32>
    %99 = vector.extract_strided_slice %90 {offsets = [0, 0, 128], sizes = [5, 8, 64], strides = [1, 1, 1]} : vector<5x8x192xf32> to vector<5x8x64xf32>
    %100 = math.tanh %99 : vector<5x8x64xf32>
    %cst_29 = arith.constant 1.000000e+00 : f32
    %101 = vector.broadcast %cst_29 : f32 to vector<5x8x64xf32>
    %102 = arith.subf %101, %97 : vector<5x8x64xf32>
    %103 = arith.mulf %102, %85 : vector<5x8x64xf32>
    %104 = arith.mulf %97, %100 : vector<5x8x64xf32>
    %105 = arith.addf %103, %104 : vector<5x8x64xf32>
    %106 = math.tanh %105 : vector<5x8x64xf32>
    %107 = arith.mulf %106, %98 : vector<5x8x64xf32>
    %108 = vector.extract_strided_slice %107 {offsets = [0, 4, 0], sizes = [5, 4, 64], strides = [1, 1, 1]} : vector<5x8x64xf32> to vector<5x4x64xf32>
    %109 = vector.extract_strided_slice %107 {offsets = [0, 0, 0], sizes = [5, 4, 64], strides = [1, 1, 1]} : vector<5x8x64xf32> to vector<5x4x64xf32>
    %110 = tpu.concatenate %108, %109 in 1 : vector<5x4x64xf32>, vector<5x4x64xf32> -> vector<5x8x64xf32>
    %111 = arith.select %6, %107, %110 : vector<5x8x64xi1>, vector<5x8x64xf32>
    %c4_i32 = arith.constant 4 : i32
    "tpu.trace_start"() <{level = 10 : i32, message = "hnk,hkg->hng"}> : () -> ()
    %cst_30 = arith.constant dense<0.000000e+00> : vector<5x8x192xf32>
    %112 = tpu.matmul %111, %3, %cst_30 {dimension_numbers = #tpu.dot_dimension_numbers<[2], [1], [1], [2], [0, 0, 0, 1, 1, 2], [0], [0]>} : vector<5x8x64xf32>, vector<5x64x192xf32>, vector<5x8x192xf32> -> vector<5x8x192xf32>
    "tpu.trace_stop"() : () -> ()
    %113 = arith.index_cast %c4_i32 : i32 to index
    %c0_31 = arith.constant 0 : index
    %c0_32 = arith.constant 0 : index
    %c0_33 = arith.constant 0 : index
    %114 = vector.load %arg1[%113, %c0_31, %c0_32, %c0_33] : memref<5x5x8x192xf32, #tpu.memory_space<vmem>>, vector<1x5x8x192xf32>
    %115 = vector.shape_cast %114 : vector<1x5x8x192xf32> to vector<5x8x192xf32>
    %116 = arith.addf %112, %115 : vector<5x8x192xf32>
    %117 = vector.extract_strided_slice %116 {offsets = [0, 0, 0], sizes = [5, 8, 128], strides = [1, 1, 1]} : vector<5x8x192xf32> to vector<5x8x128xf32>
    %118 = arith.negf %117 : vector<5x8x128xf32>
    %119 = math.exp %118 : vector<5x8x128xf32>
    %cst_34 = arith.constant 1.000000e+00 : f32
    %120 = vector.broadcast %cst_34 : f32 to vector<5x8x128xf32>
    %121 = arith.addf %120, %119 : vector<5x8x128xf32>
    %122 = arith.divf %120, %121 : vector<5x8x128xf32>
    %123 = vector.extract_strided_slice %122 {offsets = [0, 0, 0], sizes = [5, 8, 64], strides = [1, 1, 1]} : vector<5x8x128xf32> to vector<5x8x64xf32>
    %124 = vector.extract_strided_slice %122 {offsets = [0, 0, 64], sizes = [5, 8, 64], strides = [1, 1, 1]} : vector<5x8x128xf32> to vector<5x8x64xf32>
    %125 = vector.extract_strided_slice %116 {offsets = [0, 0, 128], sizes = [5, 8, 64], strides = [1, 1, 1]} : vector<5x8x192xf32> to vector<5x8x64xf32>
    %126 = math.tanh %125 : vector<5x8x64xf32>
    %cst_35 = arith.constant 1.000000e+00 : f32
    %127 = vector.broadcast %cst_35 : f32 to vector<5x8x64xf32>
    %128 = arith.subf %127, %123 : vector<5x8x64xf32>
    %129 = arith.mulf %128, %111 : vector<5x8x64xf32>
    %130 = arith.mulf %123, %126 : vector<5x8x64xf32>
    %131 = arith.addf %129, %130 : vector<5x8x64xf32>
    %132 = math.tanh %131 : vector<5x8x64xf32>
    %133 = arith.mulf %132, %124 : vector<5x8x64xf32>
    %134 = vector.extract_strided_slice %133 {offsets = [0, 4, 0], sizes = [5, 4, 64], strides = [1, 1, 1]} : vector<5x8x64xf32> to vector<5x4x64xf32>
    %135 = vector.extract_strided_slice %133 {offsets = [0, 0, 0], sizes = [5, 4, 64], strides = [1, 1, 1]} : vector<5x8x64xf32> to vector<5x4x64xf32>
    %136 = tpu.concatenate %134, %135 in 1 : vector<5x4x64xf32>, vector<5x4x64xf32> -> vector<5x8x64xf32>
    %137 = arith.select %6, %133, %136 : vector<5x8x64xi1>, vector<5x8x64xf32>
    %c5_i32 = arith.constant 5 : i32
    %c0_36 = arith.constant 0 : index
    %c0_37 = arith.constant 0 : index
    %c0_38 = arith.constant 0 : index
    %138 = vector.load %arg4[%c0_36, %c0_37, %c0_38] : memref<5x8x64xf32, #tpu.memory_space<vmem>>, vector<5x8x64xf32>
    tpu.vector_store %arg4[%c0_36, %c0_37, %c0_38], %137 {strides = array<i32>} : memref<5x8x64xf32, #tpu.memory_space<vmem>>, vector<5x8x64xf32>,
    %c0_i32_39 = arith.constant 0 : i32
    %139 = arith.cmpi eq, %arg0, %c0_i32_39 : i32
    %140 = arith.extui %139 : i1 to i32
    %c0_i32_40 = arith.constant 0 : i32
    %141 = arith.cmpi ne, %140, %c0_i32_40 : i32
    scf.if %141 {
      %142 = vector.extract_strided_slice %137 {offsets = [0, 4, 0], sizes = [5, 4, 64], strides = [1, 1, 1]} : vector<5x8x64xf32> to vector<5x4x64xf32>
      %143 = vector.extract_strided_slice %137 {offsets = [0, 0, 0], sizes = [5, 4, 64], strides = [1, 1, 1]} : vector<5x8x64xf32> to vector<5x4x64xf32>
      %144 = tpu.concatenate %142, %143 in 1 : vector<5x4x64xf32>, vector<5x4x64xf32> -> vector<5x8x64xf32>
      %145 = arith.select %6, %137, %144 : vector<5x8x64xi1>, vector<5x8x64xf32>
      %c0_41 = arith.constant 0 : index
      %c0_42 = arith.constant 0 : index
      %c0_43 = arith.constant 0 : index
      %146 = vector.load %arg3[%c0_41, %c0_42, %c0_43] : memref<5x8x64xf32, #tpu.memory_space<vmem>>, vector<5x8x64xf32>
      tpu.vector_store %arg3[%c0_41, %c0_42, %c0_43], %145 {strides = array<i32>} : memref<5x8x64xf32, #tpu.memory_space<vmem>>, vector<5x8x64xf32>,
    } else {
    }
    return
  }
  func.func @transform_0(%arg0: i32) -> (i32, i32, i32, i32) {
    %c0_i32 = arith.constant 0 : i32
    %c0_i32_0 = arith.constant 0 : i32
    %c0_i32_1 = arith.constant 0 : i32
    %c0_i32_2 = arith.constant 0 : i32
    return %arg0, %c0_i32, %c0_i32_0, %c0_i32_1 : i32, i32, i32, i32
  }
  func.func @transform_1(%arg0: i32) -> (i32, i32, i32) {
    %c0_i32 = arith.constant 0 : i32
    %c0_i32_0 = arith.constant 0 : i32
    %c0_i32_1 = arith.constant 0 : i32
    %c0_i32_2 = arith.constant 0 : i32
    return %c0_i32, %c0_i32_0, %c0_i32_1 : i32, i32, i32
  }
  func.func @transform_2(%arg0: i32) -> (i32, i32, i32) {
    %c0_i32 = arith.constant 0 : i32
    %c0_i32_0 = arith.constant 0 : i32
    %c0_i32_1 = arith.constant 0 : i32
    %c0_i32_2 = arith.constant 0 : i32
    return %c0_i32, %c0_i32_0, %c0_i32_1 : i32, i32, i32
  }
}

</mosaic_0001>

<llo_original>
// kernel: pn_witran_forward.1
$region0: #{pn_witran_forward.1}
  #allocation0 [shape = 'u32[]', space=smem, size = 0x4, offset = 0x4, fixed_abs, tag = 'smem constant byte address 0x4 - core index']
  #allocation1 [shape = 'u32[72,128]{1,0:T(1,128)}', space=vmem, size = 0x9000, scoped, tag = 'internal scratch']
  #allocation2 [shape = 'f32[5,8,64]{2,1,0:T(8,128)}', space=vmem, size = 0x5000, scoped, tag = 'scratch operand']
  %s0 = inlined_call_operand.vmem [shape: f32[5,5,8,192], index: 0, kind: input, shape index: {}]
  %s1 = inlined_call_operand.vmem [shape: f32[5,64,192], index: 1, kind: input, shape index: {}]
  %s2 = inlined_call_operand.vmem [shape: f32[5,8,64], index: 2, kind: output, shape index: {}]
  %s3 = sld [smem:[#allocation0]]
  $region26: #{pn_witran_forward.1} parent=0
    _
  %s5 = ssub.s32 1, %s3
  %s6 = scalar_select 0, %s5, %s3
  // Predicated region
  $region2: #{pn_witran_forward.1} parent=0 // pred_check
    _
  $region3: #{pn_witran_forward.1} parent=0 // pred_check_branch
    %8 = sbr.rel (0) target = $region5
  $region4: #{pn_witran_forward.1} parent=0 // pred_region
    _
  $region5: #{pn_witran_forward.1} parent=0 // pred_fallthru
    _
  // Predicated region
  $region6: #{pn_witran_forward.1} parent=0 // pred_check
    _
  $region7: #{pn_witran_forward.1} parent=0 // pred_check_branch
    %10 = sbr.rel (0) target = $region9
  $region8: #{pn_witran_forward.1} parent=0 // pred_region
    _
  $region9: #{pn_witran_forward.1} parent=0 // pred_fallthru
    _
  %p11 = scmp.eq.s32.totalorder 0, 0
  // Predicated region
  $region10: #{pn_witran_forward.1} parent=0 // pred_check
    %p12 = pneg %p11
  $region11: #{pn_witran_forward.1} parent=0 // pred_check_branch
    %14 = sbr.rel (%p12) target = $region13
  $region12: #{pn_witran_forward.1} parent=0 // pred_region
    %vm15 = vcmask 523264
    %16 = vst.msk [vmem:[#allocation2] sm:$0xff] %vm15, 0.0
    %17 = vst.msk [vmem:[#allocation2 + $0x8] sm:$0xff] %vm15, 0.0
    %18 = vst.msk [vmem:[#allocation2 + $0x10] sm:$0xff] %vm15, 0.0
    %19 = vst.msk [vmem:[#allocation2 + $0x18] sm:$0xff] %vm15, 0.0
    %20 = vst.msk [vmem:[#allocation2 + $0x20] sm:$0xff] %vm15, 0.0
  $region13: #{pn_witran_forward.1} parent=0 // pred_fallthru
    _
  %v21 = vld [vmem:[%s1] sm:$0xff]
  %v22 = vld [vmem:[%s1 + $0x8] sm:$0xff]
  %v23 = vld [vmem:[%s1 + $0x10] sm:$0xff]
  %v24 = vld [vmem:[%s1 + $0x18] sm:$0xff]
  %v25 = vld [vmem:[%s1 + $0x20] sm:$0xff]
  %v26 = vld [vmem:[%s1 + $0x28] sm:$0xff]
  %v27 = vld [vmem:[%s1 + $0x30] sm:$0xff]
  %v28 = vld [vmem:[%s1 + $0x38] sm:$0xff]
  %v29 = vld [vmem:[%s1 + $0x40] sm:$0xff]
  %v30 = vld [vmem:[%s1 + $0x48] sm:$0xff]
  %v31 = vld [vmem:[%s1 + $0x50] sm:$0xff]
  %v32 = vld [vmem:[%s1 + $0x58] sm:$0xff]
  %v33 = vld [vmem:[%s1 + $0x60] sm:$0xff]
  %v34 = vld [vmem:[%s1 + $0x68] sm:$0xff]
  %v35 = vld [vmem:[%s1 + $0x70] sm:$0xff]
  %v36 = vld [vmem:[%s1 + $0x78] sm:$0xff]
  %v37 = vld [vmem:[%s1 + $0x80] sm:$0xff]
  %v38 = vld [vmem:[%s1 + $0x88] sm:$0xff]
  %v39 = vld [vmem:[%s1 + $0x90] sm:$0xff]
  %v40 = vld [vmem:[%s1 + $0x98] sm:$0xff]
  %v41 = vld [vmem:[%s1 + $0xa0] sm:$0xff]
  %v42 = vld [vmem:[%s1 + $0xa8] sm:$0xff]
  %v43 = vld [vmem:[%s1 + $0xb0] sm:$0xff]
  %v44 = vld [vmem:[%s1 + $0xb8] sm:$0xff]
  %v45 = vld [vmem:[%s1 + $0xc0] sm:$0xff]
  %v46 = vld [vmem:[%s1 + $0xc8] sm:$0xff]
  %v47 = vld [vmem:[%s1 + $0xd0] sm:$0xff]
  %v48 = vld [vmem:[%s1 + $0xd8] sm:$0xff]
  %v49 = vld [vmem:[%s1 + $0xe0] sm:$0xff]
  %v50 = vld [vmem:[%s1 + $0xe8] sm:$0xff]
  %v51 = vld [vmem:[%s1 + $0xf0] sm:$0xff]
  %v52 = vld [vmem:[%s1 + $0xf8] sm:$0xff]
  %v53 = vld [vmem:[%s1 + $0x100] sm:$0xff]
  %v54 = vld [vmem:[%s1 + $0x108] sm:$0xff]
  %v55 = vld [vmem:[%s1 + $0x110] sm:$0xff]
  %v56 = vld [vmem:[%s1 + $0x118] sm:$0xff]
  %v57 = vld [vmem:[%s1 + $0x120] sm:$0xff]
  %v58 = vld [vmem:[%s1 + $0x128] sm:$0xff]
  %v59 = vld [vmem:[%s1 + $0x130] sm:$0xff]
  %v60 = vld [vmem:[%s1 + $0x138] sm:$0xff]
  %v61 = vld [vmem:[%s1 + $0x140] sm:$0xff]
  %v62 = vld [vmem:[%s1 + $0x148] sm:$0xff]
  %v63 = vld [vmem:[%s1 + $0x150] sm:$0xff]
  %v64 = vld [vmem:[%s1 + $0x158] sm:$0xff]
  %v65 = vld [vmem:[%s1 + $0x160] sm:$0xff]
  %v66 = vld [vmem:[%s1 + $0x168] sm:$0xff]
  %v67 = vld [vmem:[%s1 + $0x170] sm:$0xff]
  %v68 = vld [vmem:[%s1 + $0x178] sm:$0xff]
  %v69 = vld [vmem:[%s1 + $0x180] sm:$0xff]
  %v70 = vld [vmem:[%s1 + $0x188] sm:$0xff]
  %v71 = vld [vmem:[%s1 + $0x190] sm:$0xff]
  %v72 = vld [vmem:[%s1 + $0x198] sm:$0xff]
  %v73 = vld [vmem:[%s1 + $0x1a0] sm:$0xff]
  %v74 = vld [vmem:[%s1 + $0x1a8] sm:$0xff]
  %v75 = vld [vmem:[%s1 + $0x1b0] sm:$0xff]
  %v76 = vld [vmem:[%s1 + $0x1b8] sm:$0xff]
  %v77 = vld [vmem:[%s1 + $0x1c0] sm:$0xff]
  %v78 = vld [vmem:[%s1 + $0x1c8] sm:$0xff]
  %v79 = vld [vmem:[%s1 + $0x1d0] sm:$0xff]
  %v80 = vld [vmem:[%s1 + $0x1d8] sm:$0xff]
  %v81 = vld [vmem:[%s1 + $0x1e0] sm:$0xff]
  %v82 = vld [vmem:[%s1 + $0x1e8] sm:$0xff]
  %v83 = vld [vmem:[%s1 + $0x1f0] sm:$0xff]
  %v84 = vld [vmem:[%s1 + $0x1f8] sm:$0xff]
  %v85 = vld [vmem:[%s1 + $0x200] sm:$0xff]
  %v86 = vld [vmem:[%s1 + $0x208] sm:$0xff]
  %v87 = vld [vmem:[%s1 + $0x210] sm:$0xff]
  %v88 = vld [vmem:[%s1 + $0x218] sm:$0xff]
  %v89 = vld [vmem:[%s1 + $0x220] sm:$0xff]
  %v90 = vld [vmem:[%s1 + $0x228] sm:$0xff]
  %v91 = vld [vmem:[%s1 + $0x230] sm:$0xff]
  %v92 = vld [vmem:[%s1 + $0x238] sm:$0xff]
  %v93 = vld [vmem:[%s1 + $0x240] sm:$0xff]
  %v94 = vld [vmem:[%s1 + $0x248] sm:$0xff]
  %v95 = vld [vmem:[%s1 + $0x250] sm:$0xff]
  %v96 = vld [vmem:[%s1 + $0x258] sm:$0xff]
  %v97 = vld [vmem:[%s1 + $0x260] sm:$0xff]
  %v98 = vld [vmem:[%s1 + $0x268] sm:$0xff]
  %v99 = vld [vmem:[%s1 + $0x270] sm:$0xff]
  %v100 = vld [vmem:[%s1 + $0x278] sm:$0xff]
  %v101 = vlaneseq
  %v102 = vand.u32 %v101, 127
  %vm103 = vcmp.lt.s32.totalorder %v102, 32
  %v104 = vld [vmem:[#allocation2] sm:$0xff]
  %v105 = vld [vmem:[#allocation2 + $0x8] sm:$0xff]
  %v106 = vld [vmem:[#allocation2 + $0x10] sm:$0xff]
  %v107 = vld [vmem:[#allocation2 + $0x18] sm:$0xff]
  %v108 = vld [vmem:[#allocation2 + $0x20] sm:$0xff]
  %v109 = vld [vmem:[%s0] sm:$0xff]
  %v110 = vld [vmem:[%s0 + $0x8] sm:$0xff]
  %v111 = vld [vmem:[%s0 + $0x10] sm:$0xff]
  %v112 = vld [vmem:[%s0 + $0x18] sm:$0xff]
  %v113 = vld [vmem:[%s0 + $0x20] sm:$0xff]
  %v114 = vld [vmem:[%s0 + $0x28] sm:$0xff]
  %v115 = vld [vmem:[%s0 + $0x30] sm:$0xff]
  %v116 = vld [vmem:[%s0 + $0x38] sm:$0xff]
  %v117 = vld [vmem:[%s0 + $0x40] sm:$0xff]
  %v118 = vld [vmem:[%s0 + $0x48] sm:$0xff]
  %vm119 = vcmask 523264
  %v121 = vsel %vm119, %v104, 0
  %123 = vmatpush.msra.mxu0 0.0
  %124 = vmatpush.msra.mxu0 0.0
  %125 = vmatpush.msra.mxu0 0.0
  %126 = vmatpush.msra.mxu0 0.0
  %127 = vmatpush.msra.mxu0 0.0
  %128 = vmatpush.msra.mxu0 0.0
  %129 = vmatpush.msra.mxu0 0.0
  %130 = vmatpush.msra.mxu0 0.0
  %131 = vmatpush.msra.mxu0 %v35
  %132 = vmatpush.msra.mxu0 %v33
  %133 = vmatpush.msra.mxu0 %v31
  %134 = vmatpush.msra.mxu0 %v29
  %135 = vmatpush.msra.mxu0 %v27
  %136 = vmatpush.msra.mxu0 %v25
  %137 = vmatpush.msra.mxu0 %v23
  %138 = vmatpush.msra.mxu0 %v21
  %139 = vmatmul.f32.gmra.mxu0 %v121
  %v140 = vpop.f32.mrf.mxu0
  %v141 = vadd.f32 %v109, %v140
  %142 = vdwg.mxu0
  %143 = vmatpush.msra.mxu0 0.0
  %144 = vmatpush.msra.mxu0 0.0
  %145 = vmatpush.msra.mxu0 0.0
  %146 = vmatpush.msra.mxu0 0.0
  %147 = vmatpush.msra.mxu0 0.0
  %148 = vmatpush.msra.mxu0 0.0
  %149 = vmatpush.msra.mxu0 0.0
  %150 = vmatpush.msra.mxu0 0.0
  %151 = vmatpush.msra.mxu0 %v36
  %152 = vmatpush.msra.mxu0 %v34
  %153 = vmatpush.msra.mxu0 %v32
  %154 = vmatpush.msra.mxu0 %v30
  %155 = vmatpush.msra.mxu0 %v28
  %156 = vmatpush.msra.mxu0 %v26
  %157 = vmatpush.msra.mxu0 %v24
  %158 = vmatpush.msra.mxu0 %v22
  %159 = vmatmul.f32.gmra.mxu0 %v121
  %v160 = vpop.f32.mrf.mxu0
  %v161 = vadd.f32 %v110, %v160
  %162 = vdwg.mxu0
  %v164 = vsel %vm119, %v105, 0
  %166 = vmatpush.msra.mxu0 0.0
  %167 = vmatpush.msra.mxu0 0.0
  %168 = vmatpush.msra.mxu0 0.0
  %169 = vmatpush.msra.mxu0 0.0
  %170 = vmatpush.msra.mxu0 0.0
  %171 = vmatpush.msra.mxu0 0.0
  %172 = vmatpush.msra.mxu0 0.0
  %173 = vmatpush.msra.mxu0 0.0
  %174 = vmatpush.msra.mxu0 %v51
  %175 = vmatpush.msra.mxu0 %v49
  %176 = vmatpush.msra.mxu0 %v47
  %177 = vmatpush.msra.mxu0 %v45
  %178 = vmatpush.msra.mxu0 %v43
  %179 = vmatpush.msra.mxu0 %v41
  %180 = vmatpush.msra.mxu0 %v39
  %181 = vmatpush.msra.mxu0 %v37
  %182 = vmatmul.f32.gmra.mxu0 %v164
  %v183 = vpop.f32.mrf.mxu0
  %v184 = vadd.f32 %v111, %v183
  %185 = vdwg.mxu0
  %186 = vmatpush.msra.mxu0 0.0
  %187 = vmatpush.msra.mxu0 0.0
  %188 = vmatpush.msra.mxu0 0.0
  %189 = vmatpush.msra.mxu0 0.0
  %190 = vmatpush.msra.mxu0 0.0
  %191 = vmatpush.msra.mxu0 0.0
  %192 = vmatpush.msra.mxu0 0.0
  %193 = vmatpush.msra.mxu0 0.0
  %194 = vmatpush.msra.mxu0 %v52
  %195 = vmatpush.msra.mxu0 %v50
  %196 = vmatpush.msra.mxu0 %v48
  %197 = vmatpush.msra.mxu0 %v46
  %198 = vmatpush.msra.mxu0 %v44
  %199 = vmatpush.msra.mxu0 %v42
  %200 = vmatpush.msra.mxu0 %v40
  %201 = vmatpush.msra.mxu0 %v38
  %202 = vmatmul.f32.gmra.mxu0 %v164
  %v203 = vpop.f32.mrf.mxu0
  %v204 = vadd.f32 %v112, %v203
  %205 = vdwg.mxu0
  %v207 = vsel %vm119, %v106, 0
  %209 = vmatpush.msra.mxu0 0.0
  %210 = vmatpush.msra.mxu0 0.0
  %211 = vmatpush.msra.mxu0 0.0
  %212 = vmatpush.msra.mxu0 0.0
  %213 = vmatpush.msra.mxu0 0.0
  %214 = vmatpush.msra.mxu0 0.0
  %215 = vmatpush.msra.mxu0 0.0
  %216 = vmatpush.msra.mxu0 0.0
  %217 = vmatpush.msra.mxu0 %v67
  %218 = vmatpush.msra.mxu0 %v65
  %219 = vmatpush.msra.mxu0 %v63
  %220 = vmatpush.msra.mxu0 %v61
  %221 = vmatpush.msra.mxu0 %v59
  %222 = vmatpush.msra.mxu0 %v57
  %223 = vmatpush.msra.mxu0 %v55
  %224 = vmatpush.msra.mxu0 %v53
  %225 = vmatmul.f32.gmra.mxu0 %v207
  %v226 = vpop.f32.mrf.mxu0
  %v227 = vadd.f32 %v113, %v226
  %228 = vdwg.mxu0
  %229 = vmatpush.msra.mxu0 0.0
  %230 = vmatpush.msra.mxu0 0.0
  %231 = vmatpush.msra.mxu0 0.0
  %232 = vmatpush.msra.mxu0 0.0
  %233 = vmatpush.msra.mxu0 0.0
  %234 = vmatpush.msra.mxu0 0.0
  %235 = vmatpush.msra.mxu0 0.0
  %236 = vmatpush.msra.mxu0 0.0
  %237 = vmatpush.msra.mxu0 %v68
  %238 = vmatpush.msra.mxu0 %v66
  %239 = vmatpush.msra.mxu0 %v64
  %240 = vmatpush.msra.mxu0 %v62
  %241 = vmatpush.msra.mxu0 %v60
  %242 = vmatpush.msra.mxu0 %v58
  %243 = vmatpush.msra.mxu0 %v56
  %244 = vmatpush.msra.mxu0 %v54
  %245 = vmatmul.f32.gmra.mxu0 %v207
  %v246 = vpop.f32.mrf.mxu0
  %v247 = vadd.f32 %v114, %v246
  %248 = vdwg.mxu0
  %v250 = vsel %vm119, %v107, 0
  %252 = vmatpush.msra.mxu0 0.0
  %253 = vmatpush.msra.mxu0 0.0
  %254 = vmatpush.msra.mxu0 0.0
  %255 = vmatpush.msra.mxu0 0.0
  %256 = vmatpush.msra.mxu0 0.0
  %257 = vmatpush.msra.mxu0 0.0
  %258 = vmatpush.msra.mxu0 0.0
  %259 = vmatpush.msra.mxu0 0.0
  %260 = vmatpush.msra.mxu0 %v83
  %261 = vmatpush.msra.mxu0 %v81
  %262 = vmatpush.msra.mxu0 %v79
  %263 = vmatpush.msra.mxu0 %v77
  %264 = vmatpush.msra.mxu0 %v75
  %265 = vmatpush.msra.mxu0 %v73
  %266 = vmatpush.msra.mxu0 %v71
  %267 = vmatpush.msra.mxu0 %v69
  %268 = vmatmul.f32.gmra.mxu0 %v250
  %v269 = vpop.f32.mrf.mxu0
  %v270 = vadd.f32 %v115, %v269
  %271 = vdwg.mxu0
  %272 = vmatpush.msra.mxu0 0.0
  %273 = vmatpush.msra.mxu0 0.0
  %274 = vmatpush.msra.mxu0 0.0
  %275 = vmatpush.msra.mxu0 0.0
  %276 = vmatpush.msra.mxu0 0.0
  %277 = vmatpush.msra.mxu0 0.0
  %278 = vmatpush.msra.mxu0 0.0
  %279 = vmatpush.msra.mxu0 0.0
  %280 = vmatpush.msra.mxu0 %v84
  %281 = vmatpush.msra.mxu0 %v82
  %282 = vmatpush.msra.mxu0 %v80
  %283 = vmatpush.msra.mxu0 %v78
  %284 = vmatpush.msra.mxu0 %v76
  %285 = vmatpush.msra.mxu0 %v74
  %286 = vmatpush.msra.mxu0 %v72
  %287 = vmatpush.msra.mxu0 %v70
  %288 = vmatmul.f32.gmra.mxu0 %v250
  %v289 = vpop.f32.mrf.mxu0
  %v290 = vadd.f32 %v116, %v289
  %291 = vdwg.mxu0
  %v293 = vsel %vm119, %v108, 0
  %295 = vmatpush.msra.mxu0 0.0
  %296 = vmatpush.msra.mxu0 0.0
  %297 = vmatpush.msra.mxu0 0.0
  %298 = vmatpush.msra.mxu0 0.0
  %299 = vmatpush.msra.mxu0 0.0
  %300 = vmatpush.msra.mxu0 0.0
  %301 = vmatpush.msra.mxu0 0.0
  %302 = vmatpush.msra.mxu0 0.0
  %303 = vmatpush.msra.mxu0 %v99
  %304 = vmatpush.msra.mxu0 %v97
  %305 = vmatpush.msra.mxu0 %v95
  %306 = vmatpush.msra.mxu0 %v93
  %307 = vmatpush.msra.mxu0 %v91
  %308 = vmatpush.msra.mxu0 %v89
  %309 = vmatpush.msra.mxu0 %v87
  %310 = vmatpush.msra.mxu0 %v85
  %311 = vmatmul.f32.gmra.mxu0 %v293
  %v312 = vpop.f32.mrf.mxu0
  %v313 = vadd.f32 %v117, %v312
  %314 = vdwg.mxu0
  %315 = vmatpush.msra.mxu0 0.0
  %316 = vmatpush.msra.mxu0 0.0
  %317 = vmatpush.msra.mxu0 0.0
  %318 = vmatpush.msra.mxu0 0.0
  %319 = vmatpush.msra.mxu0 0.0
  %320 = vmatpush.msra.mxu0 0.0
  %321 = vmatpush.msra.mxu0 0.0
  %322 = vmatpush.msra.mxu0 0.0
  %323 = vmatpush.msra.mxu0 %v100
  %324 = vmatpush.msra.mxu0 %v98
  %325 = vmatpush.msra.mxu0 %v96
  %326 = vmatpush.msra.mxu0 %v94
  %327 = vmatpush.msra.mxu0 %v92
  %328 = vmatpush.msra.mxu0 %v90
  %329 = vmatpush.msra.mxu0 %v88
  %330 = vmatpush.msra.mxu0 %v86
  %331 = vmatmul.f32.gmra.mxu0 %v293
  %v332 = vpop.f32.mrf.mxu0
  %v333 = vadd.f32 %v118, %v332
  %334 = vdwg.mxu0
  %v335 = vxor.u32 %v141, 2147483648
  %v336 = vxor.u32 %v184, 2147483648
  %v337 = vxor.u32 %v227, 2147483648
  %v338 = vxor.u32 %v270, 2147483648
  %v339 = vxor.u32 %v313, 2147483648
  %v340 = vmul.f32 %v335, 1.442695
  %v341 = vpow.pop %v340
  %v342 = vmul.f32 %v336, 1.442695
  %v343 = vpow.pop %v342
  %v344 = vmul.f32 %v337, 1.442695
  %v345 = vpow.pop %v344
  %v346 = vmul.f32 %v338, 1.442695
  %v347 = vpow.pop %v346
  %v348 = vmul.f32 %v339, 1.442695
  %v349 = vpow.pop %v348
  %v350 = vadd.f32 %v341, 1.0
  %v351 = vadd.f32 %v343, 1.0
  %v352 = vadd.f32 %v345, 1.0
  %v353 = vadd.f32 %v347, 1.0
  %v354 = vadd.f32 %v349, 1.0
  %v355 = vrcp.pop %v350
  %v356 = vmul.f32 %v350, %v355
  %v357 = vsub.f32 1.0, %v356
  %v358 = vmul.f32 %v355, %v357
  %v359 = vadd.f32 %v355, %v358
  %vm360 = vweird.f32 %v350
  %vm361 = vweird.f32 %v355
  %vm362 = vmor %vm360, %vm361
  %v363 = vsel %vm362, %v355, %v359
  %v364 = vand.u32 2147483647, %v350
  %vm365 = vcmp.eq.f32.partialorder %v364, 8.507059e+37
  %v366 = vand.u32 %v350, 2147483648
  %v367 = vor.u32 1.1754944e-38, %v366
  %v368 = vsel %vm365, %v367, %v363
  %v369 = vmul.f32 1.0, %v368
  %v370 = vrcp.pop %v351
  %v371 = vmul.f32 %v351, %v370
  %v372 = vsub.f32 1.0, %v371
  %v373 = vmul.f32 %v370, %v372
  %v374 = vadd.f32 %v370, %v373
  %vm375 = vweird.f32 %v351
  %vm376 = vweird.f32 %v370
  %vm377 = vmor %vm375, %vm376
  %v378 = vsel %vm377, %v370, %v374
  %v379 = vand.u32 2147483647, %v351
  %vm380 = vcmp.eq.f32.partialorder %v379, 8.507059e+37
  %v381 = vand.u32 %v351, 2147483648
  %v382 = vor.u32 1.1754944e-38, %v381
  %v383 = vsel %vm380, %v382, %v378
  %v384 = vmul.f32 1.0, %v383
  %v385 = vrcp.pop %v352
  %v386 = vmul.f32 %v352, %v385
  %v387 = vsub.f32 1.0, %v386
  %v388 = vmul.f32 %v385, %v387
  %v389 = vadd.f32 %v385, %v388
  %vm390 = vweird.f32 %v352
  %vm391 = vweird.f32 %v385
  %vm392 = vmor %vm390, %vm391
  %v393 = vsel %vm392, %v385, %v389
  %v394 = vand.u32 2147483647, %v352
  %vm395 = vcmp.eq.f32.partialorder %v394, 8.507059e+37
  %v396 = vand.u32 %v352, 2147483648
  %v397 = vor.u32 1.1754944e-38, %v396
  %v398 = vsel %vm395, %v397, %v393
  %v399 = vmul.f32 1.0, %v398
  %v400 = vrcp.pop %v353
  %v401 = vmul.f32 %v353, %v400
  %v402 = vsub.f32 1.0, %v401
  %v403 = vmul.f32 %v400, %v402
  %v404 = vadd.f32 %v400, %v403
  %vm405 = vweird.f32 %v353
  %vm406 = vweird.f32 %v400
  %vm407 = vmor %vm405, %vm406
  %v408 = vsel %vm407, %v400, %v404
  %v409 = vand.u32 2147483647, %v353
  %vm410 = vcmp.eq.f32.partialorder %v409, 8.507059e+37
  %v411 = vand.u32 %v353, 2147483648
  %v412 = vor.u32 1.1754944e-38, %v411
  %v413 = vsel %vm410, %v412, %v408
  %v414 = vmul.f32 1.0, %v413
  %v415 = vrcp.pop %v354
  %v416 = vmul.f32 %v354, %v415
  %v417 = vsub.f32 1.0, %v416
  %v418 = vmul.f32 %v415, %v417
  %v419 = vadd.f32 %v415, %v418
  %vm420 = vweird.f32 %v354
  %vm421 = vweird.f32 %v415
  %vm422 = vmor %vm420, %vm421
  %v423 = vsel %vm422, %v415, %v419
  %v424 = vand.u32 2147483647, %v354
  %vm425 = vcmp.eq.f32.partialorder %v424, 8.507059e+37
  %v426 = vand.u32 %v354, 2147483648
  %v427 = vor.u32 1.1754944e-38, %v426
  %v428 = vsel %vm425, %v427, %v423
  %v429 = vmul.f32 1.0, %v428
  %v430 = vtanh.pop %v161
  %v431 = vtanh.pop %v204
  %v432 = vtanh.pop %v247
  %v433 = vtanh.pop %v290
  %v434 = vtanh.pop %v333
  %v435 = vsub.f32 1.0, %v369
  %v436 = vsub.f32 1.0, %v384
  %v437 = vsub.f32 1.0, %v399
  %v438 = vsub.f32 1.0, %v414
  %v439 = vsub.f32 1.0, %v429
  %v440 = vmul.f32 %v435, %v104
  %v441 = vmul.f32 %v436, %v105
  %v442 = vmul.f32 %v437, %v106
  %v443 = vmul.f32 %v438, %v107
  %v444 = vmul.f32 %v439, %v108
  %v445 = vmul.f32 %v369, %v430
  %v446 = vmul.f32 %v384, %v431
  %v447 = vmul.f32 %v399, %v432
  %v448 = vmul.f32 %v414, %v433
  %v449 = vmul.f32 %v429, %v434
  %v450 = vadd.f32 %v440, %v445
  %v451 = vadd.f32 %v441, %v446
  %v452 = vadd.f32 %v442, %v447
  %v453 = vadd.f32 %v443, %v448
  %v454 = vadd.f32 %v444, %v449
  %v455 = vtanh.pop %v450
  %v456 = vtanh.pop %v451
  %v457 = vtanh.pop %v452
  %v458 = vtanh.pop %v453
  %v459 = vtanh.pop %v454
  %465 = vrot.lane.b32.xlu0 %v369, 64
  %v466 = vpop.permute.xlu0 %465
  %467 = vrot.lane.b32.xlu0 %v384, 64
  %v468 = vpop.permute.xlu0 %467
  %469 = vrot.lane.b32.xlu0 %v399, 64
  %v470 = vpop.permute.xlu0 %469
  %471 = vrot.lane.b32.xlu0 %v414, 64
  %v472 = vpop.permute.xlu0 %471
  %473 = vrot.lane.b32.xlu0 %v429, 64
  %v474 = vpop.permute.xlu0 %473
  %v480 = vmul.f32 %v455, %v466
  %v481 = vmul.f32 %v456, %v468
  %v482 = vmul.f32 %v457, %v470
  %v483 = vmul.f32 %v458, %v472
  %v484 = vmul.f32 %v459, %v474
  %v490 = vrot.slane %v480, 4
  %v491 = vrot.slane %v481, 4
  %v492 = vrot.slane %v482, 4
  %v493 = vrot.slane %v483, 4
  %v494 = vrot.slane %v484, 4
  %vm500 = vcmask 1043456
  %v501 = vsel %vm500, %v490, %v490
  %v502 = vsel %vm500, %v491, %v491
  %v503 = vsel %vm500, %v492, %v492
  %v504 = vsel %vm500, %v493, %v493
  %v505 = vsel %vm500, %v494, %v494
  %v506 = vsel %vm103, %v480, %v501
  %v507 = vsel %vm103, %v481, %v502
  %v508 = vsel %vm103, %v482, %v503
  %v509 = vsel %vm103, %v483, %v504
  %v510 = vsel %vm103, %v484, %v505
  %s511 = scalar_lea.vmem %s0, 80
  %v512 = vld [vmem:[%s511] sm:$0xff]
  %v513 = vld [vmem:[%s511 + $0x8] sm:$0xff]
  %v514 = vld [vmem:[%s511 + $0x10] sm:$0xff]
  %v515 = vld [vmem:[%s511 + $0x18] sm:$0xff]
  %v516 = vld [vmem:[%s511 + $0x20] sm:$0xff]
  %v517 = vld [vmem:[%s511 + $0x28] sm:$0xff]
  %v518 = vld [vmem:[%s511 + $0x30] sm:$0xff]
  %v519 = vld [vmem:[%s511 + $0x38] sm:$0xff]
  %v520 = vld [vmem:[%s511 + $0x40] sm:$0xff]
  %v521 = vld [vmem:[%s511 + $0x48] sm:$0xff]
  %v523 = vsel %vm119, %v506, 0
  %525 = vmatpush.msra.mxu0 0.0
  %526 = vmatpush.msra.mxu0 0.0
  %527 = vmatpush.msra.mxu0 0.0
  %528 = vmatpush.msra.mxu0 0.0
  %529 = vmatpush.msra.mxu0 0.0
  %530 = vmatpush.msra.mxu0 0.0
  %531 = vmatpush.msra.mxu0 0.0
  %532 = vmatpush.msra.mxu0 0.0
  %533 = vmatpush.msra.mxu0 %v35
  %534 = vmatpush.msra.mxu0 %v33
  %535 = vmatpush.msra.mxu0 %v31
  %536 = vmatpush.msra.mxu0 %v29
  %537 = vmatpush.msra.mxu0 %v27
  %538 = vmatpush.msra.mxu0 %v25
  %539 = vmatpush.msra.mxu0 %v23
  %540 = vmatpush.msra.mxu0 %v21
  %541 = vmatmul.f32.gmra.mxu0 %v523
  %v542 = vpop.f32.mrf.mxu0
  %v543 = vadd.f32 %v512, %v542
  %544 = vdwg.mxu0
  %545 = vmatpush.msra.mxu0 0.0
  %546 = vmatpush.msra.mxu0 0.0
  %547 = vmatpush.msra.mxu0 0.0
  %548 = vmatpush.msra.mxu0 0.0
  %549 = vmatpush.msra.mxu0 0.0
  %550 = vmatpush.msra.mxu0 0.0
  %551 = vmatpush.msra.mxu0 0.0
  %552 = vmatpush.msra.mxu0 0.0
  %553 = vmatpush.msra.mxu0 %v36
  %554 = vmatpush.msra.mxu0 %v34
  %555 = vmatpush.msra.mxu0 %v32
  %556 = vmatpush.msra.mxu0 %v30
  %557 = vmatpush.msra.mxu0 %v28
  %558 = vmatpush.msra.mxu0 %v26
  %559 = vmatpush.msra.mxu0 %v24
  %560 = vmatpush.msra.mxu0 %v22
  %561 = vmatmul.f32.gmra.mxu0 %v523
  %v562 = vpop.f32.mrf.mxu0
  %v563 = vadd.f32 %v513, %v562
  %564 = vdwg.mxu0
  %v566 = vsel %vm119, %v507, 0
  %568 = vmatpush.msra.mxu0 0.0
  %569 = vmatpush.msra.mxu0 0.0
  %570 = vmatpush.msra.mxu0 0.0
  %571 = vmatpush.msra.mxu0 0.0
  %572 = vmatpush.msra.mxu0 0.0
  %573 = vmatpush.msra.mxu0 0.0
  %574 = vmatpush.msra.mxu0 0.0
  %575 = vmatpush.msra.mxu0 0.0
  %576 = vmatpush.msra.mxu0 %v51
  %577 = vmatpush.msra.mxu0 %v49
  %578 = vmatpush.msra.mxu0 %v47
  %579 = vmatpush.msra.mxu0 %v45
  %580 = vmatpush.msra.mxu0 %v43
  %581 = vmatpush.msra.mxu0 %v41
  %582 = vmatpush.msra.mxu0 %v39
  %583 = vmatpush.msra.mxu0 %v37
  %584 = vmatmul.f32.gmra.mxu0 %v566
  %v585 = vpop.f32.mrf.mxu0
  %v586 = vadd.f32 %v514, %v585
  %587 = vdwg.mxu0
  %588 = vmatpush.msra.mxu0 0.0
  %589 = vmatpush.msra.mxu0 0.0
  %590 = vmatpush.msra.mxu0 0.0
  %591 = vmatpush.msra.mxu0 0.0
  %592 = vmatpush.msra.mxu0 0.0
  %593 = vmatpush.msra.mxu0 0.0
  %594 = vmatpush.msra.mxu0 0.0
  %595 = vmatpush.msra.mxu0 0.0
  %596 = vmatpush.msra.mxu0 %v52
  %597 = vmatpush.msra.mxu0 %v50
  %598 = vmatpush.msra.mxu0 %v48
  %599 = vmatpush.msra.mxu0 %v46
  %600 = vmatpush.msra.mxu0 %v44
  %601 = vmatpush.msra.mxu0 %v42
  %602 = vmatpush.msra.mxu0 %v40
  %603 = vmatpush.msra.mxu0 %v38
  %604 = vmatmul.f32.gmra.mxu0 %v566
  %v605 = vpop.f32.mrf.mxu0
  %v606 = vadd.f32 %v515, %v605
  %607 = vdwg.mxu0
  %v609 = vsel %vm119, %v508, 0
  %611 = vmatpush.msra.mxu0 0.0
  %612 = vmatpush.msra.mxu0 0.0
  %613 = vmatpush.msra.mxu0 0.0
  %614 = vmatpush.msra.mxu0 0.0
  %615 = vmatpush.msra.mxu0 0.0
  %616 = vmatpush.msra.mxu0 0.0
  %617 = vmatpush.msra.mxu0 0.0
  %618 = vmatpush.msra.mxu0 0.0
  %619 = vmatpush.msra.mxu0 %v67
  %620 = vmatpush.msra.mxu0 %v65
  %621 = vmatpush.msra.mxu0 %v63
  %622 = vmatpush.msra.mxu0 %v61
  %623 = vmatpush.msra.mxu0 %v59
  %624 = vmatpush.msra.mxu0 %v57
  %625 = vmatpush.msra.mxu0 %v55
  %626 = vmatpush.msra.mxu0 %v53
  %627 = vmatmul.f32.gmra.mxu0 %v609
  %v628 = vpop.f32.mrf.mxu0
  %v629 = vadd.f32 %v516, %v628
  %630 = vdwg.mxu0
  %631 = vmatpush.msra.mxu0 0.0
  %632 = vmatpush.msra.mxu0 0.0
  %633 = vmatpush.msra.mxu0 0.0
  %634 = vmatpush.msra.mxu0 0.0
  %635 = vmatpush.msra.mxu0 0.0
  %636 = vmatpush.msra.mxu0 0.0
  %637 = vmatpush.msra.mxu0 0.0
  %638 = vmatpush.msra.mxu0 0.0
  %639 = vmatpush.msra.mxu0 %v68
  %640 = vmatpush.msra.mxu0 %v66
  %641 = vmatpush.msra.mxu0 %v64
  %642 = vmatpush.msra.mxu0 %v62
  %643 = vmatpush.msra.mxu0 %v60
  %644 = vmatpush.msra.mxu0 %v58
  %645 = vmatpush.msra.mxu0 %v56
  %646 = vmatpush.msra.mxu0 %v54
  %647 = vmatmul.f32.gmra.mxu0 %v609
  %v648 = vpop.f32.mrf.mxu0
  %v649 = vadd.f32 %v517, %v648
  %650 = vdwg.mxu0
  %v652 = vsel %vm119, %v509, 0
  %654 = vmatpush.msra.mxu0 0.0
  %655 = vmatpush.msra.mxu0 0.0
  %656 = vmatpush.msra.mxu0 0.0
  %657 = vmatpush.msra.mxu0 0.0
  %658 = vmatpush.msra.mxu0 0.0
  %659 = vmatpush.msra.mxu0 0.0
  %660 = vmatpush.msra.mxu0 0.0
  %661 = vmatpush.msra.mxu0 0.0
  %662 = vmatpush.msra.mxu0 %v83
  %663 = vmatpush.msra.mxu0 %v81
  %664 = vmatpush.msra.mxu0 %v79
  %665 = vmatpush.msra.mxu0 %v77
  %666 = vmatpush.msra.mxu0 %v75
  %667 = vmatpush.msra.mxu0 %v73
  %668 = vmatpush.msra.mxu0 %v71
  %669 = vmatpush.msra.mxu0 %v69
  %670 = vmatmul.f32.gmra.mxu0 %v652
  %v671 = vpop.f32.mrf.mxu0
  %v672 = vadd.f32 %v518, %v671
  %673 = vdwg.mxu0
  %674 = vmatpush.msra.mxu0 0.0
  %675 = vmatpush.msra.mxu0 0.0
  %676 = vmatpush.msra.mxu0 0.0
  %677 = vmatpush.msra.mxu0 0.0
  %678 = vmatpush.msra.mxu0 0.0
  %679 = vmatpush.msra.mxu0 0.0
  %680 = vmatpush.msra.mxu0 0.0
  %681 = vmatpush.msra.mxu0 0.0
  %682 = vmatpush.msra.mxu0 %v84
  %683 = vmatpush.msra.mxu0 %v82
  %684 = vmatpush.msra.mxu0 %v80
  %685 = vmatpush.msra.mxu0 %v78
  %686 = vmatpush.msra.mxu0 %v76
  %687 = vmatpush.msra.mxu0 %v74
  %688 = vmatpush.msra.mxu0 %v72
  %689 = vmatpush.msra.mxu0 %v70
  %690 = vmatmul.f32.gmra.mxu0 %v652
  %v691 = vpop.f32.mrf.mxu0
  %v692 = vadd.f32 %v519, %v691
  %693 = vdwg.mxu0
  %v695 = vsel %vm119, %v510, 0
  %697 = vmatpush.msra.mxu0 0.0
  %698 = vmatpush.msra.mxu0 0.0
  %699 = vmatpush.msra.mxu0 0.0
  %700 = vmatpush.msra.mxu0 0.0
  %701 = vmatpush.msra.mxu0 0.0
  %702 = vmatpush.msra.mxu0 0.0
  %703 = vmatpush.msra.mxu0 0.0
  %704 = vmatpush.msra.mxu0 0.0
  %705 = vmatpush.msra.mxu0 %v99
  %706 = vmatpush.msra.mxu0 %v97
  %707 = vmatpush.msra.mxu0 %v95
  %708 = vmatpush.msra.mxu0 %v93
  %709 = vmatpush.msra.mxu0 %v91
  %710 = vmatpush.msra.mxu0 %v89
  %711 = vmatpush.msra.mxu0 %v87
  %712 = vmatpush.msra.mxu0 %v85
  %713 = vmatmul.f32.gmra.mxu0 %v695
  %v714 = vpop.f32.mrf.mxu0
  %v715 = vadd.f32 %v520, %v714
  %716 = vdwg.mxu0
  %717 = vmatpush.msra.mxu0 0.0
  %718 = vmatpush.msra.mxu0 0.0
  %719 = vmatpush.msra.mxu0 0.0
  %720 = vmatpush.msra.mxu0 0.0
  %721 = vmatpush.msra.mxu0 0.0
  %722 = vmatpush.msra.mxu0 0.0
  %723 = vmatpush.msra.mxu0 0.0
  %724 = vmatpush.msra.mxu0 0.0
  %725 = vmatpush.msra.mxu0 %v100
  %726 = vmatpush.msra.mxu0 %v98
  %727 = vmatpush.msra.mxu0 %v96
  %728 = vmatpush.msra.mxu0 %v94
  %729 = vmatpush.msra.mxu0 %v92
  %730 = vmatpush.msra.mxu0 %v90
  %731 = vmatpush.msra.mxu0 %v88
  %732 = vmatpush.msra.mxu0 %v86
  %733 = vmatmul.f32.gmra.mxu0 %v695
  %v734 = vpop.f32.mrf.mxu0
  %v735 = vadd.f32 %v521, %v734
  %736 = vdwg.mxu0
  %v737 = vxor.u32 %v543, 2147483648
  %v738 = vxor.u32 %v586, 2147483648
  %v739 = vxor.u32 %v629, 2147483648
  %v740 = vxor.u32 %v672, 2147483648
  %v741 = vxor.u32 %v715, 2147483648
  %v742 = vmul.f32 %v737, 1.442695
  %v743 = vpow.pop %v742
  %v744 = vmul.f32 %v738, 1.442695
  %v745 = vpow.pop %v744
  %v746 = vmul.f32 %v739, 1.442695
  %v747 = vpow.pop %v746
  %v748 = vmul.f32 %v740, 1.442695
  %v749 = vpow.pop %v748
  %v750 = vmul.f32 %v741, 1.442695
  %v751 = vpow.pop %v750
  %v752 = vadd.f32 %v743, 1.0
  %v753 = vadd.f32 %v745, 1.0
  %v754 = vadd.f32 %v747, 1.0
  %v755 = vadd.f32 %v749, 1.0
  %v756 = vadd.f32 %v751, 1.0
  %v757 = vrcp.pop %v752
  %v758 = vmul.f32 %v752, %v757
  %v759 = vsub.f32 1.0, %v758
  %v760 = vmul.f32 %v757, %v759
  %v761 = vadd.f32 %v757, %v760
  %vm762 = vweird.f32 %v752
  %vm763 = vweird.f32 %v757
  %vm764 = vmor %vm762, %vm763
  %v765 = vsel %vm764, %v757, %v761
  %v766 = vand.u32 2147483647, %v752
  %vm767 = vcmp.eq.f32.partialorder %v766, 8.507059e+37
  %v768 = vand.u32 %v752, 2147483648
  %v769 = vor.u32 1.1754944e-38, %v768
  %v770 = vsel %vm767, %v769, %v765
  %v771 = vmul.f32 1.0, %v770
  %v772 = vrcp.pop %v753
  %v773 = vmul.f32 %v753, %v772
  %v774 = vsub.f32 1.0, %v773
  %v775 = vmul.f32 %v772, %v774
  %v776 = vadd.f32 %v772, %v775
  %vm777 = vweird.f32 %v753
  %vm778 = vweird.f32 %v772
  %vm779 = vmor %vm777, %vm778
  %v780 = vsel %vm779, %v772, %v776
  %v781 = vand.u32 2147483647, %v753
  %vm782 = vcmp.eq.f32.partialorder %v781, 8.507059e+37
  %v783 = vand.u32 %v753, 2147483648
  %v784 = vor.u32 1.1754944e-38, %v783
  %v785 = vsel %vm782, %v784, %v780
  %v786 = vmul.f32 1.0, %v785
  %v787 = vrcp.pop %v754
  %v788 = vmul.f32 %v754, %v787
  %v789 = vsub.f32 1.0, %v788
  %v790 = vmul.f32 %v787, %v789
  %v791 = vadd.f32 %v787, %v790
  %vm792 = vweird.f32 %v754
  %vm793 = vweird.f32 %v787
  %vm794 = vmor %vm792, %vm793
  %v795 = vsel %vm794, %v787, %v791
  %v796 = vand.u32 2147483647, %v754
  %vm797 = vcmp.eq.f32.partialorder %v796, 8.507059e+37
  %v798 = vand.u32 %v754, 2147483648
  %v799 = vor.u32 1.1754944e-38, %v798
  %v800 = vsel %vm797, %v799, %v795
  %v801 = vmul.f32 1.0, %v800
  %v802 = vrcp.pop %v755
  %v803 = vmul.f32 %v755, %v802
  %v804 = vsub.f32 1.0, %v803
  %v805 = vmul.f32 %v802, %v804
  %v806 = vadd.f32 %v802, %v805
  %vm807 = vweird.f32 %v755
  %vm808 = vweird.f32 %v802
  %vm809 = vmor %vm807, %vm808
  %v810 = vsel %vm809, %v802, %v806
  %v811 = vand.u32 2147483647, %v755
  %vm812 = vcmp.eq.f32.partialorder %v811, 8.507059e+37
  %v813 = vand.u32 %v755, 2147483648
  %v814 = vor.u32 1.1754944e-38, %v813
  %v815 = vsel %vm812, %v814, %v810
  %v816 = vmul.f32 1.0, %v815
  %v817 = vrcp.pop %v756
  %v818 = vmul.f32 %v756, %v817
  %v819 = vsub.f32 1.0, %v818
  %v820 = vmul.f32 %v817, %v819
  %v821 = vadd.f32 %v817, %v820
  %vm822 = vweird.f32 %v756
  %vm823 = vweird.f32 %v817
  %vm824 = vmor %vm822, %vm823
  %v825 = vsel %vm824, %v817, %v821
  %v826 = vand.u32 2147483647, %v756
  %vm827 = vcmp.eq.f32.partialorder %v826, 8.507059e+37
  %v828 = vand.u32 %v756, 2147483648
  %v829 = vor.u32 1.1754944e-38, %v828
  %v830 = vsel %vm827, %v829, %v825
  %v831 = vmul.f32 1.0, %v830
  %v832 = vtanh.pop %v563
  %v833 = vtanh.pop %v606
  %v834 = vtanh.pop %v649
  %v835 = vtanh.pop %v692
  %v836 = vtanh.pop %v735
  %v837 = vsub.f32 1.0, %v771
  %v838 = vsub.f32 1.0, %v786
  %v839 = vsub.f32 1.0, %v801
  %v840 = vsub.f32 1.0, %v816
  %v841 = vsub.f32 1.0, %v831
  %v842 = vmul.f32 %v837, %v506
  %v843 = vmul.f32 %v838, %v507
  %v844 = vmul.f32 %v839, %v508
  %v845 = vmul.f32 %v840, %v509
  %v846 = vmul.f32 %v841, %v510
  %v847 = vmul.f32 %v771, %v832
  %v848 = vmul.f32 %v786, %v833
  %v849 = vmul.f32 %v801, %v834
  %v850 = vmul.f32 %v816, %v835
  %v851 = vmul.f32 %v831, %v836
  %v852 = vadd.f32 %v842, %v847
  %v853 = vadd.f32 %v843, %v848
  %v854 = vadd.f32 %v844, %v849
  %v855 = vadd.f32 %v845, %v850
  %v856 = vadd.f32 %v846, %v851
  %v857 = vtanh.pop %v852
  %v858 = vtanh.pop %v853
  %v859 = vtanh.pop %v854
  %v860 = vtanh.pop %v855
  %v861 = vtanh.pop %v856
  %867 = vrot.lane.b32.xlu0 %v771, 64
  %v868 = vpop.permute.xlu0 %867
  %869 = vrot.lane.b32.xlu0 %v786, 64
  %v870 = vpop.permute.xlu0 %869
  %871 = vrot.lane.b32.xlu0 %v801, 64
  %v872 = vpop.permute.xlu0 %871
  %873 = vrot.lane.b32.xlu0 %v816, 64
  %v874 = vpop.permute.xlu0 %873
  %875 = vrot.lane.b32.xlu0 %v831, 64
  %v876 = vpop.permute.xlu0 %875
  %v882 = vmul.f32 %v857, %v868
  %v883 = vmul.f32 %v858, %v870
  %v884 = vmul.f32 %v859, %v872
  %v885 = vmul.f32 %v860, %v874
  %v886 = vmul.f32 %v861, %v876
  %v892 = vrot.slane %v882, 4
  %v893 = vrot.slane %v883, 4
  %v894 = vrot.slane %v884, 4
  %v895 = vrot.slane %v885, 4
  %v896 = vrot.slane %v886, 4
  %v902 = vsel %vm500, %v892, %v892
  %v903 = vsel %vm500, %v893, %v893
  %v904 = vsel %vm500, %v894, %v894
  %v905 = vsel %vm500, %v895, %v895
  %v906 = vsel %vm500, %v896, %v896
  %v907 = vsel %vm103, %v882, %v902
  %v908 = vsel %vm103, %v883, %v903
  %v909 = vsel %vm103, %v884, %v904
  %v910 = vsel %vm103, %v885, %v905
  %v911 = vsel %vm103, %v886, %v906
  %s912 = scalar_lea.vmem %s0, 160
  %v913 = vld [vmem:[%s912] sm:$0xff]
  %v914 = vld [vmem:[%s912 + $0x8] sm:$0xff]
  %v915 = vld [vmem:[%s912 + $0x10] sm:$0xff]
  %v916 = vld [vmem:[%s912 + $0x18] sm:$0xff]
  %v917 = vld [vmem:[%s912 + $0x20] sm:$0xff]
  %v918 = vld [vmem:[%s912 + $0x28] sm:$0xff]
  %v919 = vld [vmem:[%s912 + $0x30] sm:$0xff]
  %v920 = vld [vmem:[%s912 + $0x38] sm:$0xff]
  %v921 = vld [vmem:[%s912 + $0x40] sm:$0xff]
  %v922 = vld [vmem:[%s912 + $0x48] sm:$0xff]
  %v924 = vsel %vm119, %v907, 0
  %926 = vmatpush.msra.mxu0 0.0
  %927 = vmatpush.msra.mxu0 0.0
  %928 = vmatpush.msra.mxu0 0.0
  %929 = vmatpush.msra.mxu0 0.0
  %930 = vmatpush.msra.mxu0 0.0
  %931 = vmatpush.msra.mxu0 0.0
  %932 = vmatpush.msra.mxu0 0.0
  %933 = vmatpush.msra.mxu0 0.0
  %934 = vmatpush.msra.mxu0 %v35
  %935 = vmatpush.msra.mxu0 %v33
  %936 = vmatpush.msra.mxu0 %v31
  %937 = vmatpush.msra.mxu0 %v29
  %938 = vmatpush.msra.mxu0 %v27
  %939 = vmatpush.msra.mxu0 %v25
  %940 = vmatpush.msra.mxu0 %v23
  %941 = vmatpush.msra.mxu0 %v21
  %942 = vmatmul.f32.gmra.mxu0 %v924
  %v943 = vpop.f32.mrf.mxu0
  %v944 = vadd.f32 %v913, %v943
  %945 = vdwg.mxu0
  %946 = vmatpush.msra.mxu0 0.0
  %947 = vmatpush.msra.mxu0 0.0
  %948 = vmatpush.msra.mxu0 0.0
  %949 = vmatpush.msra.mxu0 0.0
  %950 = vmatpush.msra.mxu0 0.0
  %951 = vmatpush.msra.mxu0 0.0
  %952 = vmatpush.msra.mxu0 0.0
  %953 = vmatpush.msra.mxu0 0.0
  %954 = vmatpush.msra.mxu0 %v36
  %955 = vmatpush.msra.mxu0 %v34
  %956 = vmatpush.msra.mxu0 %v32
  %957 = vmatpush.msra.mxu0 %v30
  %958 = vmatpush.msra.mxu0 %v28
  %959 = vmatpush.msra.mxu0 %v26
  %960 = vmatpush.msra.mxu0 %v24
  %961 = vmatpush.msra.mxu0 %v22
  %962 = vmatmul.f32.gmra.mxu0 %v924
  %v963 = vpop.f32.mrf.mxu0
  %v964 = vadd.f32 %v914, %v963
  %965 = vdwg.mxu0
  %v967 = vsel %vm119, %v908, 0
  %969 = vmatpush.msra.mxu0 0.0
  %970 = vmatpush.msra.mxu0 0.0
  %971 = vmatpush.msra.mxu0 0.0
  %972 = vmatpush.msra.mxu0 0.0
  %973 = vmatpush.msra.mxu0 0.0
  %974 = vmatpush.msra.mxu0 0.0
  %975 = vmatpush.msra.mxu0 0.0
  %976 = vmatpush.msra.mxu0 0.0
  %977 = vmatpush.msra.mxu0 %v51
  %978 = vmatpush.msra.mxu0 %v49
  %979 = vmatpush.msra.mxu0 %v47
  %980 = vmatpush.msra.mxu0 %v45
  %981 = vmatpush.msra.mxu0 %v43
  %982 = vmatpush.msra.mxu0 %v41
  %983 = vmatpush.msra.mxu0 %v39
  %984 = vmatpush.msra.mxu0 %v37
  %985 = vmatmul.f32.gmra.mxu0 %v967
  %v986 = vpop.f32.mrf.mxu0
  %v987 = vadd.f32 %v915, %v986
  %988 = vdwg.mxu0
  %989 = vmatpush.msra.mxu0 0.0
  %990 = vmatpush.msra.mxu0 0.0
  %991 = vmatpush.msra.mxu0 0.0
  %992 = vmatpush.msra.mxu0 0.0
  %993 = vmatpush.msra.mxu0 0.0
  %994 = vmatpush.msra.mxu0 0.0
  %995 = vmatpush.msra.mxu0 0.0
  %996 = vmatpush.msra.mxu0 0.0
  %997 = vmatpush.msra.mxu0 %v52
  %998 = vmatpush.msra.mxu0 %v50
  %999 = vmatpush.msra.mxu0 %v48
  %1000 = vmatpush.msra.mxu0 %v46
  %1001 = vmatpush.msra.mxu0 %v44
  %1002 = vmatpush.msra.mxu0 %v42
  %1003 = vmatpush.msra.mxu0 %v40
  %1004 = vmatpush.msra.mxu0 %v38
  %1005 = vmatmul.f32.gmra.mxu0 %v967
  %v1006 = vpop.f32.mrf.mxu0
  %v1007 = vadd.f32 %v916, %v1006
  %1008 = vdwg.mxu0
  %v1010 = vsel %vm119, %v909, 0
  %1012 = vmatpush.msra.mxu0 0.0
  %1013 = vmatpush.msra.mxu0 0.0
  %1014 = vmatpush.msra.mxu0 0.0
  %1015 = vmatpush.msra.mxu0 0.0
  %1016 = vmatpush.msra.mxu0 0.0
  %1017 = vmatpush.msra.mxu0 0.0
  %1018 = vmatpush.msra.mxu0 0.0
  %1019 = vmatpush.msra.mxu0 0.0
  %1020 = vmatpush.msra.mxu0 %v67
  %1021 = vmatpush.msra.mxu0 %v65
  %1022 = vmatpush.msra.mxu0 %v63
  %1023 = vmatpush.msra.mxu0 %v61
  %1024 = vmatpush.msra.mxu0 %v59
  %1025 = vmatpush.msra.mxu0 %v57
  %1026 = vmatpush.msra.mxu0 %v55
  %1027 = vmatpush.msra.mxu0 %v53
  %1028 = vmatmul.f32.gmra.mxu0 %v1010
  %v1029 = vpop.f32.mrf.mxu0
  %v1030 = vadd.f32 %v917, %v1029
  %1031 = vdwg.mxu0
  %1032 = vmatpush.msra.mxu0 0.0
  %1033 = vmatpush.msra.mxu0 0.0
  %1034 = vmatpush.msra.mxu0 0.0
  %1035 = vmatpush.msra.mxu0 0.0
  %1036 = vmatpush.msra.mxu0 0.0
  %1037 = vmatpush.msra.mxu0 0.0
  %1038 = vmatpush.msra.mxu0 0.0
  %1039 = vmatpush.msra.mxu0 0.0
  %1040 = vmatpush.msra.mxu0 %v68
  %1041 = vmatpush.msra.mxu0 %v66
  %1042 = vmatpush.msra.mxu0 %v64
  %1043 = vmatpush.msra.mxu0 %v62
  %1044 = vmatpush.msra.mxu0 %v60
  %1045 = vmatpush.msra.mxu0 %v58
  %1046 = vmatpush.msra.mxu0 %v56
  %1047 = vmatpush.msra.mxu0 %v54
  %1048 = vmatmul.f32.gmra.mxu0 %v1010
  %v1049 = vpop.f32.mrf.mxu0
  %v1050 = vadd.f32 %v918, %v1049
  %1051 = vdwg.mxu0
  %v1053 = vsel %vm119, %v910, 0
  %1055 = vmatpush.msra.mxu0 0.0
  %1056 = vmatpush.msra.mxu0 0.0
  %1057 = vmatpush.msra.mxu0 0.0
  %1058 = vmatpush.msra.mxu0 0.0
  %1059 = vmatpush.msra.mxu0 0.0
  %1060 = vmatpush.msra.mxu0 0.0
  %1061 = vmatpush.msra.mxu0 0.0
  %1062 = vmatpush.msra.mxu0 0.0
  %1063 = vmatpush.msra.mxu0 %v83
  %1064 = vmatpush.msra.mxu0 %v81
  %1065 = vmatpush.msra.mxu0 %v79
  %1066 = vmatpush.msra.mxu0 %v77
  %1067 = vmatpush.msra.mxu0 %v75
  %1068 = vmatpush.msra.mxu0 %v73
  %1069 = vmatpush.msra.mxu0 %v71
  %1070 = vmatpush.msra.mxu0 %v69
  %1071 = vmatmul.f32.gmra.mxu0 %v1053
  %v1072 = vpop.f32.mrf.mxu0
  %v1073 = vadd.f32 %v919, %v1072
  %1074 = vdwg.mxu0
  %1075 = vmatpush.msra.mxu0 0.0
  %1076 = vmatpush.msra.mxu0 0.0
  %1077 = vmatpush.msra.mxu0 0.0
  %1078 = vmatpush.msra.mxu0 0.0
  %1079 = vmatpush.msra.mxu0 0.0
  %1080 = vmatpush.msra.mxu0 0.0
  %1081 = vmatpush.msra.mxu0 0.0
  %1082 = vmatpush.msra.mxu0 0.0
  %1083 = vmatpush.msra.mxu0 %v84
  %1084 = vmatpush.msra.mxu0 %v82
  %1085 = vmatpush.msra.mxu0 %v80
  %1086 = vmatpush.msra.mxu0 %v78
  %1087 = vmatpush.msra.mxu0 %v76
  %1088 = vmatpush.msra.mxu0 %v74
  %1089 = vmatpush.msra.mxu0 %v72
  %1090 = vmatpush.msra.mxu0 %v70
  %1091 = vmatmul.f32.gmra.mxu0 %v1053
  %v1092 = vpop.f32.mrf.mxu0
  %v1093 = vadd.f32 %v920, %v1092
  %1094 = vdwg.mxu0
  %v1096 = vsel %vm119, %v911, 0
  %1098 = vmatpush.msra.mxu0 0.0
  %1099 = vmatpush.msra.mxu0 0.0
  %1100 = vmatpush.msra.mxu0 0.0
  %1101 = vmatpush.msra.mxu0 0.0
  %1102 = vmatpush.msra.mxu0 0.0
  %1103 = vmatpush.msra.mxu0 0.0
  %1104 = vmatpush.msra.mxu0 0.0
  %1105 = vmatpush.msra.mxu0 0.0
  %1106 = vmatpush.msra.mxu0 %v99
  %1107 = vmatpush.msra.mxu0 %v97
  %1108 = vmatpush.msra.mxu0 %v95
  %1109 = vmatpush.msra.mxu0 %v93
  %1110 = vmatpush.msra.mxu0 %v91
  %1111 = vmatpush.msra.mxu0 %v89
  %1112 = vmatpush.msra.mxu0 %v87
  %1113 = vmatpush.msra.mxu0 %v85
  %1114 = vmatmul.f32.gmra.mxu0 %v1096
  %v1115 = vpop.f32.mrf.mxu0
  %v1116 = vadd.f32 %v921, %v1115
  %1117 = vdwg.mxu0
  %1118 = vmatpush.msra.mxu0 0.0
  %1119 = vmatpush.msra.mxu0 0.0
  %1120 = vmatpush.msra.mxu0 0.0
  %1121 = vmatpush.msra.mxu0 0.0
  %1122 = vmatpush.msra.mxu0 0.0
  %1123 = vmatpush.msra.mxu0 0.0
  %1124 = vmatpush.msra.mxu0 0.0
  %1125 = vmatpush.msra.mxu0 0.0
  %1126 = vmatpush.msra.mxu0 %v100
  %1127 = vmatpush.msra.mxu0 %v98
  %1128 = vmatpush.msra.mxu0 %v96
  %1129 = vmatpush.msra.mxu0 %v94
  %1130 = vmatpush.msra.mxu0 %v92
  %1131 = vmatpush.msra.mxu0 %v90
  %1132 = vmatpush.msra.mxu0 %v88
  %1133 = vmatpush.msra.mxu0 %v86
  %1134 = vmatmul.f32.gmra.mxu0 %v1096
  %v1135 = vpop.f32.mrf.mxu0
  %v1136 = vadd.f32 %v922, %v1135
  %1137 = vdwg.mxu0
  %v1138 = vxor.u32 %v944, 2147483648
  %v1139 = vxor.u32 %v987, 2147483648
  %v1140 = vxor.u32 %v1030, 2147483648
  %v1141 = vxor.u32 %v1073, 2147483648
  %v1142 = vxor.u32 %v1116, 2147483648
  %v1143 = vmul.f32 %v1138, 1.442695
  %v1144 = vpow.pop %v1143
  %v1145 = vmul.f32 %v1139, 1.442695
  %v1146 = vpow.pop %v1145
  %v1147 = vmul.f32 %v1140, 1.442695
  %v1148 = vpow.pop %v1147
  %v1149 = vmul.f32 %v1141, 1.442695
  %v1150 = vpow.pop %v1149
  %v1151 = vmul.f32 %v1142, 1.442695
  %v1152 = vpow.pop %v1151
  %v1153 = vadd.f32 %v1144, 1.0
  %v1154 = vadd.f32 %v1146, 1.0
  %v1155 = vadd.f32 %v1148, 1.0
  %v1156 = vadd.f32 %v1150, 1.0
  %v1157 = vadd.f32 %v1152, 1.0
  %v1158 = vrcp.pop %v1153
  %v1159 = vmul.f32 %v1153, %v1158
  %v1160 = vsub.f32 1.0, %v1159
  %v1161 = vmul.f32 %v1158, %v1160
  %v1162 = vadd.f32 %v1158, %v1161
  %vm1163 = vweird.f32 %v1153
  %vm1164 = vweird.f32 %v1158
  %vm1165 = vmor %vm1163, %vm1164
  %v1166 = vsel %vm1165, %v1158, %v1162
  %v1167 = vand.u32 2147483647, %v1153
  %vm1168 = vcmp.eq.f32.partialorder %v1167, 8.507059e+37
  %v1169 = vand.u32 %v1153, 2147483648
  %v1170 = vor.u32 1.1754944e-38, %v1169
  %v1171 = vsel %vm1168, %v1170, %v1166
  %v1172 = vmul.f32 1.0, %v1171
  %v1173 = vrcp.pop %v1154
  %v1174 = vmul.f32 %v1154, %v1173
  %v1175 = vsub.f32 1.0, %v1174
  %v1176 = vmul.f32 %v1173, %v1175
  %v1177 = vadd.f32 %v1173, %v1176
  %vm1178 = vweird.f32 %v1154
  %vm1179 = vweird.f32 %v1173
  %vm1180 = vmor %vm1178, %vm1179
  %v1181 = vsel %vm1180, %v1173, %v1177
  %v1182 = vand.u32 2147483647, %v1154
  %vm1183 = vcmp.eq.f32.partialorder %v1182, 8.507059e+37
  %v1184 = vand.u32 %v1154, 2147483648
  %v1185 = vor.u32 1.1754944e-38, %v1184
  %v1186 = vsel %vm1183, %v1185, %v1181
  %v1187 = vmul.f32 1.0, %v1186
  %v1188 = vrcp.pop %v1155
  %v1189 = vmul.f32 %v1155, %v1188
  %v1190 = vsub.f32 1.0, %v1189
  %v1191 = vmul.f32 %v1188, %v1190
  %v1192 = vadd.f32 %v1188, %v1191
  %vm1193 = vweird.f32 %v1155
  %vm1194 = vweird.f32 %v1188
  %vm1195 = vmor %vm1193, %vm1194
  %v1196 = vsel %vm1195, %v1188, %v1192
  %v1197 = vand.u32 2147483647, %v1155
  %vm1198 = vcmp.eq.f32.partialorder %v1197, 8.507059e+37
  %v1199 = vand.u32 %v1155, 2147483648
  %v1200 = vor.u32 1.1754944e-38, %v1199
  %v1201 = vsel %vm1198, %v1200, %v1196
  %v1202 = vmul.f32 1.0, %v1201
  %v1203 = vrcp.pop %v1156
  %v1204 = vmul.f32 %v1156, %v1203
  %v1205 = vsub.f32 1.0, %v1204
  %v1206 = vmul.f32 %v1203, %v1205
  %v1207 = vadd.f32 %v1203, %v1206
  %vm1208 = vweird.f32 %v1156
  %vm1209 = vweird.f32 %v1203
  %vm1210 = vmor %vm1208, %vm1209
  %v1211 = vsel %vm1210, %v1203, %v1207
  %v1212 = vand.u32 2147483647, %v1156
  %vm1213 = vcmp.eq.f32.partialorder %v1212, 8.507059e+37
  %v1214 = vand.u32 %v1156, 2147483648
  %v1215 = vor.u32 1.1754944e-38, %v1214
  %v1216 = vsel %vm1213, %v1215, %v1211
  %v1217 = vmul.f32 1.0, %v1216
  %v1218 = vrcp.pop %v1157
  %v1219 = vmul.f32 %v1157, %v1218
  %v1220 = vsub.f32 1.0, %v1219
  %v1221 = vmul.f32 %v1218, %v1220
  %v1222 = vadd.f32 %v1218, %v1221
  %vm1223 = vweird.f32 %v1157
  %vm1224 = vweird.f32 %v1218
  %vm1225 = vmor %vm1223, %vm1224
  %v1226 = vsel %vm1225, %v1218, %v1222
  %v1227 = vand.u32 2147483647, %v1157
  %vm1228 = vcmp.eq.f32.partialorder %v1227, 8.507059e+37
  %v1229 = vand.u32 %v1157, 2147483648
  %v1230 = vor.u32 1.1754944e-38, %v1229
  %v1231 = vsel %vm1228, %v1230, %v1226
  %v1232 = vmul.f32 1.0, %v1231
  %v1233 = vtanh.pop %v964
  %v1234 = vtanh.pop %v1007
  %v1235 = vtanh.pop %v1050
  %v1236 = vtanh.pop %v1093
  %v1237 = vtanh.pop %v1136
  %v1238 = vsub.f32 1.0, %v1172
  %v1239 = vsub.f32 1.0, %v1187
  %v1240 = vsub.f32 1.0, %v1202
  %v1241 = vsub.f32 1.0, %v1217
  %v1242 = vsub.f32 1.0, %v1232
  %v1243 = vmul.f32 %v1238, %v907
  %v1244 = vmul.f32 %v1239, %v908
  %v1245 = vmul.f32 %v1240, %v909
  %v1246 = vmul.f32 %v1241, %v910
  %v1247 = vmul.f32 %v1242, %v911
  %v1248 = vmul.f32 %v1172, %v1233
  %v1249 = vmul.f32 %v1187, %v1234
  %v1250 = vmul.f32 %v1202, %v1235
  %v1251 = vmul.f32 %v1217, %v1236
  %v1252 = vmul.f32 %v1232, %v1237
  %v1253 = vadd.f32 %v1243, %v1248
  %v1254 = vadd.f32 %v1244, %v1249
  %v1255 = vadd.f32 %v1245, %v1250
  %v1256 = vadd.f32 %v1246, %v1251
  %v1257 = vadd.f32 %v1247, %v1252
  %v1258 = vtanh.pop %v1253
  %v1259 = vtanh.pop %v1254
  %v1260 = vtanh.pop %v1255
  %v1261 = vtanh.pop %v1256
  %v1262 = vtanh.pop %v1257
  %1268 = vrot.lane.b32.xlu0 %v1172, 64
  %v1269 = vpop.permute.xlu0 %1268
  %1270 = vrot.lane.b32.xlu0 %v1187, 64
  %v1271 = vpop.permute.xlu0 %1270
  %1272 = vrot.lane.b32.xlu0 %v1202, 64
  %v1273 = vpop.permute.xlu0 %1272
  %1274 = vrot.lane.b32.xlu0 %v1217, 64
  %v1275 = vpop.permute.xlu0 %1274
  %1276 = vrot.lane.b32.xlu0 %v1232, 64
  %v1277 = vpop.permute.xlu0 %1276
  %v1283 = vmul.f32 %v1258, %v1269
  %v1284 = vmul.f32 %v1259, %v1271
  %v1285 = vmul.f32 %v1260, %v1273
  %v1286 = vmul.f32 %v1261, %v1275
  %v1287 = vmul.f32 %v1262, %v1277
  %v1293 = vrot.slane %v1283, 4
  %v1294 = vrot.slane %v1284, 4
  %v1295 = vrot.slane %v1285, 4
  %v1296 = vrot.slane %v1286, 4
  %v1297 = vrot.slane %v1287, 4
  %v1303 = vsel %vm500, %v1293, %v1293
  %v1304 = vsel %vm500, %v1294, %v1294
  %v1305 = vsel %vm500, %v1295, %v1295
  %v1306 = vsel %vm500, %v1296, %v1296
  %v1307 = vsel %vm500, %v1297, %v1297
  %v1308 = vsel %vm103, %v1283, %v1303
  %v1309 = vsel %vm103, %v1284, %v1304
  %v1310 = vsel %vm103, %v1285, %v1305
  %v1311 = vsel %vm103, %v1286, %v1306
  %v1312 = vsel %vm103, %v1287, %v1307
  %s1313 = scalar_lea.vmem %s0, 240
  %v1314 = vld [vmem:[%s1313] sm:$0xff]
  %v1315 = vld [vmem:[%s1313 + $0x8] sm:$0xff]
  %v1316 = vld [vmem:[%s1313 + $0x10] sm:$0xff]
  %v1317 = vld [vmem:[%s1313 + $0x18] sm:$0xff]
  %v1318 = vld [vmem:[%s1313 + $0x20] sm:$0xff]
  %v1319 = vld [vmem:[%s1313 + $0x28] sm:$0xff]
  %v1320 = vld [vmem:[%s1313 + $0x30] sm:$0xff]
  %v1321 = vld [vmem:[%s1313 + $0x38] sm:$0xff]
  %v1322 = vld [vmem:[%s1313 + $0x40] sm:$0xff]
  %v1323 = vld [vmem:[%s1313 + $0x48] sm:$0xff]
  %v1325 = vsel %vm119, %v1308, 0
  %1327 = vmatpush.msra.mxu0 0.0
  %1328 = vmatpush.msra.mxu0 0.0
  %1329 = vmatpush.msra.mxu0 0.0
  %1330 = vmatpush.msra.mxu0 0.0
  %1331 = vmatpush.msra.mxu0 0.0
  %1332 = vmatpush.msra.mxu0 0.0
  %1333 = vmatpush.msra.mxu0 0.0
  %1334 = vmatpush.msra.mxu0 0.0
  %1335 = vmatpush.msra.mxu0 %v35
  %1336 = vmatpush.msra.mxu0 %v33
  %1337 = vmatpush.msra.mxu0 %v31
  %1338 = vmatpush.msra.mxu0 %v29
  %1339 = vmatpush.msra.mxu0 %v27
  %1340 = vmatpush.msra.mxu0 %v25
  %1341 = vmatpush.msra.mxu0 %v23
  %1342 = vmatpush.msra.mxu0 %v21
  %1343 = vmatmul.f32.gmra.mxu0 %v1325
  %v1344 = vpop.f32.mrf.mxu0
  %v1345 = vadd.f32 %v1314, %v1344
  %1346 = vdwg.mxu0
  %1347 = vmatpush.msra.mxu0 0.0
  %1348 = vmatpush.msra.mxu0 0.0
  %1349 = vmatpush.msra.mxu0 0.0
  %1350 = vmatpush.msra.mxu0 0.0
  %1351 = vmatpush.msra.mxu0 0.0
  %1352 = vmatpush.msra.mxu0 0.0
  %1353 = vmatpush.msra.mxu0 0.0
  %1354 = vmatpush.msra.mxu0 0.0
  %1355 = vmatpush.msra.mxu0 %v36
  %1356 = vmatpush.msra.mxu0 %v34
  %1357 = vmatpush.msra.mxu0 %v32
  %1358 = vmatpush.msra.mxu0 %v30
  %1359 = vmatpush.msra.mxu0 %v28
  %1360 = vmatpush.msra.mxu0 %v26
  %1361 = vmatpush.msra.mxu0 %v24
  %1362 = vmatpush.msra.mxu0 %v22
  %1363 = vmatmul.f32.gmra.mxu0 %v1325
  %v1364 = vpop.f32.mrf.mxu0
  %v1365 = vadd.f32 %v1315, %v1364
  %1366 = vdwg.mxu0
  %v1368 = vsel %vm119, %v1309, 0
  %1370 = vmatpush.msra.mxu0 0.0
  %1371 = vmatpush.msra.mxu0 0.0
  %1372 = vmatpush.msra.mxu0 0.0
  %1373 = vmatpush.msra.mxu0 0.0
  %1374 = vmatpush.msra.mxu0 0.0
  %1375 = vmatpush.msra.mxu0 0.0
  %1376 = vmatpush.msra.mxu0 0.0
  %1377 = vmatpush.msra.mxu0 0.0
  %1378 = vmatpush.msra.mxu0 %v51
  %1379 = vmatpush.msra.mxu0 %v49
  %1380 = vmatpush.msra.mxu0 %v47
  %1381 = vmatpush.msra.mxu0 %v45
  %1382 = vmatpush.msra.mxu0 %v43
  %1383 = vmatpush.msra.mxu0 %v41
  %1384 = vmatpush.msra.mxu0 %v39
  %1385 = vmatpush.msra.mxu0 %v37
  %1386 = vmatmul.f32.gmra.mxu0 %v1368
  %v1387 = vpop.f32.mrf.mxu0
  %v1388 = vadd.f32 %v1316, %v1387
  %1389 = vdwg.mxu0
  %1390 = vmatpush.msra.mxu0 0.0
  %1391 = vmatpush.msra.mxu0 0.0
  %1392 = vmatpush.msra.mxu0 0.0
  %1393 = vmatpush.msra.mxu0 0.0
  %1394 = vmatpush.msra.mxu0 0.0
  %1395 = vmatpush.msra.mxu0 0.0
  %1396 = vmatpush.msra.mxu0 0.0
  %1397 = vmatpush.msra.mxu0 0.0
  %1398 = vmatpush.msra.mxu0 %v52
  %1399 = vmatpush.msra.mxu0 %v50
  %1400 = vmatpush.msra.mxu0 %v48
  %1401 = vmatpush.msra.mxu0 %v46
  %1402 = vmatpush.msra.mxu0 %v44
  %1403 = vmatpush.msra.mxu0 %v42
  %1404 = vmatpush.msra.mxu0 %v40
  %1405 = vmatpush.msra.mxu0 %v38
  %1406 = vmatmul.f32.gmra.mxu0 %v1368
  %v1407 = vpop.f32.mrf.mxu0
  %v1408 = vadd.f32 %v1317, %v1407
  %1409 = vdwg.mxu0
  %v1411 = vsel %vm119, %v1310, 0
  %1413 = vmatpush.msra.mxu0 0.0
  %1414 = vmatpush.msra.mxu0 0.0
  %1415 = vmatpush.msra.mxu0 0.0
  %1416 = vmatpush.msra.mxu0 0.0
  %1417 = vmatpush.msra.mxu0 0.0
  %1418 = vmatpush.msra.mxu0 0.0
  %1419 = vmatpush.msra.mxu0 0.0
  %1420 = vmatpush.msra.mxu0 0.0
  %1421 = vmatpush.msra.mxu0 %v67
  %1422 = vmatpush.msra.mxu0 %v65
  %1423 = vmatpush.msra.mxu0 %v63
  %1424 = vmatpush.msra.mxu0 %v61
  %1425 = vmatpush.msra.mxu0 %v59
  %1426 = vmatpush.msra.mxu0 %v57
  %1427 = vmatpush.msra.mxu0 %v55
  %1428 = vmatpush.msra.mxu0 %v53
  %1429 = vmatmul.f32.gmra.mxu0 %v1411
  %v1430 = vpop.f32.mrf.mxu0
  %v1431 = vadd.f32 %v1318, %v1430
  %1432 = vdwg.mxu0
  %1433 = vmatpush.msra.mxu0 0.0
  %1434 = vmatpush.msra.mxu0 0.0
  %1435 = vmatpush.msra.mxu0 0.0
  %1436 = vmatpush.msra.mxu0 0.0
  %1437 = vmatpush.msra.mxu0 0.0
  %1438 = vmatpush.msra.mxu0 0.0
  %1439 = vmatpush.msra.mxu0 0.0
  %1440 = vmatpush.msra.mxu0 0.0
  %1441 = vmatpush.msra.mxu0 %v68
  %1442 = vmatpush.msra.mxu0 %v66
  %1443 = vmatpush.msra.mxu0 %v64
  %1444 = vmatpush.msra.mxu0 %v62
  %1445 = vmatpush.msra.mxu0 %v60
  %1446 = vmatpush.msra.mxu0 %v58
  %1447 = vmatpush.msra.mxu0 %v56
  %1448 = vmatpush.msra.mxu0 %v54
  %1449 = vmatmul.f32.gmra.mxu0 %v1411
  %v1450 = vpop.f32.mrf.mxu0
  %v1451 = vadd.f32 %v1319, %v1450
  %1452 = vdwg.mxu0
  %v1454 = vsel %vm119, %v1311, 0
  %1456 = vmatpush.msra.mxu0 0.0
  %1457 = vmatpush.msra.mxu0 0.0
  %1458 = vmatpush.msra.mxu0 0.0
  %1459 = vmatpush.msra.mxu0 0.0
  %1460 = vmatpush.msra.mxu0 0.0
  %1461 = vmatpush.msra.mxu0 0.0
  %1462 = vmatpush.msra.mxu0 0.0
  %1463 = vmatpush.msra.mxu0 0.0
  %1464 = vmatpush.msra.mxu0 %v83
  %1465 = vmatpush.msra.mxu0 %v81
  %1466 = vmatpush.msra.mxu0 %v79
  %1467 = vmatpush.msra.mxu0 %v77
  %1468 = vmatpush.msra.mxu0 %v75
  %1469 = vmatpush.msra.mxu0 %v73
  %1470 = vmatpush.msra.mxu0 %v71
  %1471 = vmatpush.msra.mxu0 %v69
  %1472 = vmatmul.f32.gmra.mxu0 %v1454
  %v1473 = vpop.f32.mrf.mxu0
  %v1474 = vadd.f32 %v1320, %v1473
  %1475 = vdwg.mxu0
  %1476 = vmatpush.msra.mxu0 0.0
  %1477 = vmatpush.msra.mxu0 0.0
  %1478 = vmatpush.msra.mxu0 0.0
  %1479 = vmatpush.msra.mxu0 0.0
  %1480 = vmatpush.msra.mxu0 0.0
  %1481 = vmatpush.msra.mxu0 0.0
  %1482 = vmatpush.msra.mxu0 0.0
  %1483 = vmatpush.msra.mxu0 0.0
  %1484 = vmatpush.msra.mxu0 %v84
  %1485 = vmatpush.msra.mxu0 %v82
  %1486 = vmatpush.msra.mxu0 %v80
  %1487 = vmatpush.msra.mxu0 %v78
  %1488 = vmatpush.msra.mxu0 %v76
  %1489 = vmatpush.msra.mxu0 %v74
  %1490 = vmatpush.msra.mxu0 %v72
  %1491 = vmatpush.msra.mxu0 %v70
  %1492 = vmatmul.f32.gmra.mxu0 %v1454
  %v1493 = vpop.f32.mrf.mxu0
  %v1494 = vadd.f32 %v1321, %v1493
  %1495 = vdwg.mxu0
  %v1497 = vsel %vm119, %v1312, 0
  %1499 = vmatpush.msra.mxu0 0.0
  %1500 = vmatpush.msra.mxu0 0.0
  %1501 = vmatpush.msra.mxu0 0.0
  %1502 = vmatpush.msra.mxu0 0.0
  %1503 = vmatpush.msra.mxu0 0.0
  %1504 = vmatpush.msra.mxu0 0.0
  %1505 = vmatpush.msra.mxu0 0.0
  %1506 = vmatpush.msra.mxu0 0.0
  %1507 = vmatpush.msra.mxu0 %v99
  %1508 = vmatpush.msra.mxu0 %v97
  %1509 = vmatpush.msra.mxu0 %v95
  %1510 = vmatpush.msra.mxu0 %v93
  %1511 = vmatpush.msra.mxu0 %v91
  %1512 = vmatpush.msra.mxu0 %v89
  %1513 = vmatpush.msra.mxu0 %v87
  %1514 = vmatpush.msra.mxu0 %v85
  %1515 = vmatmul.f32.gmra.mxu0 %v1497
  %v1516 = vpop.f32.mrf.mxu0
  %v1517 = vadd.f32 %v1322, %v1516
  %1518 = vdwg.mxu0
  %1519 = vmatpush.msra.mxu0 0.0
  %1520 = vmatpush.msra.mxu0 0.0
  %1521 = vmatpush.msra.mxu0 0.0
  %1522 = vmatpush.msra.mxu0 0.0
  %1523 = vmatpush.msra.mxu0 0.0
  %1524 = vmatpush.msra.mxu0 0.0
  %1525 = vmatpush.msra.mxu0 0.0
  %1526 = vmatpush.msra.mxu0 0.0
  %1527 = vmatpush.msra.mxu0 %v100
  %1528 = vmatpush.msra.mxu0 %v98
  %1529 = vmatpush.msra.mxu0 %v96
  %1530 = vmatpush.msra.mxu0 %v94
  %1531 = vmatpush.msra.mxu0 %v92
  %1532 = vmatpush.msra.mxu0 %v90
  %1533 = vmatpush.msra.mxu0 %v88
  %1534 = vmatpush.msra.mxu0 %v86
  %1535 = vmatmul.f32.gmra.mxu0 %v1497
  %v1536 = vpop.f32.mrf.mxu0
  %v1537 = vadd.f32 %v1323, %v1536
  %1538 = vdwg.mxu0
  %v1539 = vxor.u32 %v1345, 2147483648
  %v1540 = vxor.u32 %v1388, 2147483648
  %v1541 = vxor.u32 %v1431, 2147483648
  %v1542 = vxor.u32 %v1474, 2147483648
  %v1543 = vxor.u32 %v1517, 2147483648
  %v1544 = vmul.f32 %v1539, 1.442695
  %v1545 = vpow.pop %v1544
  %v1546 = vmul.f32 %v1540, 1.442695
  %v1547 = vpow.pop %v1546
  %v1548 = vmul.f32 %v1541, 1.442695
  %v1549 = vpow.pop %v1548
  %v1550 = vmul.f32 %v1542, 1.442695
  %v1551 = vpow.pop %v1550
  %v1552 = vmul.f32 %v1543, 1.442695
  %v1553 = vpow.pop %v1552
  %v1554 = vadd.f32 %v1545, 1.0
  %v1555 = vadd.f32 %v1547, 1.0
  %v1556 = vadd.f32 %v1549, 1.0
  %v1557 = vadd.f32 %v1551, 1.0
  %v1558 = vadd.f32 %v1553, 1.0
  %v1559 = vrcp.pop %v1554
  %v1560 = vmul.f32 %v1554, %v1559
  %v1561 = vsub.f32 1.0, %v1560
  %v1562 = vmul.f32 %v1559, %v1561
  %v1563 = vadd.f32 %v1559, %v1562
  %vm1564 = vweird.f32 %v1554
  %vm1565 = vweird.f32 %v1559
  %vm1566 = vmor %vm1564, %vm1565
  %v1567 = vsel %vm1566, %v1559, %v1563
  %v1568 = vand.u32 2147483647, %v1554
  %vm1569 = vcmp.eq.f32.partialorder %v1568, 8.507059e+37
  %v1570 = vand.u32 %v1554, 2147483648
  %v1571 = vor.u32 1.1754944e-38, %v1570
  %v1572 = vsel %vm1569, %v1571, %v1567
  %v1573 = vmul.f32 1.0, %v1572
  %v1574 = vrcp.pop %v1555
  %v1575 = vmul.f32 %v1555, %v1574
  %v1576 = vsub.f32 1.0, %v1575
  %v1577 = vmul.f32 %v1574, %v1576
  %v1578 = vadd.f32 %v1574, %v1577
  %vm1579 = vweird.f32 %v1555
  %vm1580 = vweird.f32 %v1574
  %vm1581 = vmor %vm1579, %vm1580
  %v1582 = vsel %vm1581, %v1574, %v1578
  %v1583 = vand.u32 2147483647, %v1555
  %vm1584 = vcmp.eq.f32.partialorder %v1583, 8.507059e+37
  %v1585 = vand.u32 %v1555, 2147483648
  %v1586 = vor.u32 1.1754944e-38, %v1585
  %v1587 = vsel %vm1584, %v1586, %v1582
  %v1588 = vmul.f32 1.0, %v1587
  %v1589 = vrcp.pop %v1556
  %v1590 = vmul.f32 %v1556, %v1589
  %v1591 = vsub.f32 1.0, %v1590
  %v1592 = vmul.f32 %v1589, %v1591
  %v1593 = vadd.f32 %v1589, %v1592
  %vm1594 = vweird.f32 %v1556
  %vm1595 = vweird.f32 %v1589
  %vm1596 = vmor %vm1594, %vm1595
  %v1597 = vsel %vm1596, %v1589, %v1593
  %v1598 = vand.u32 2147483647, %v1556
  %vm1599 = vcmp.eq.f32.partialorder %v1598, 8.507059e+37
  %v1600 = vand.u32 %v1556, 2147483648
  %v1601 = vor.u32 1.1754944e-38, %v1600
  %v1602 = vsel %vm1599, %v1601, %v1597
  %v1603 = vmul.f32 1.0, %v1602
  %v1604 = vrcp.pop %v1557
  %v1605 = vmul.f32 %v1557, %v1604
  %v1606 = vsub.f32 1.0, %v1605
  %v1607 = vmul.f32 %v1604, %v1606
  %v1608 = vadd.f32 %v1604, %v1607
  %vm1609 = vweird.f32 %v1557
  %vm1610 = vweird.f32 %v1604
  %vm1611 = vmor %vm1609, %vm1610
  %v1612 = vsel %vm1611, %v1604, %v1608
  %v1613 = vand.u32 2147483647, %v1557
  %vm1614 = vcmp.eq.f32.partialorder %v1613, 8.507059e+37
  %v1615 = vand.u32 %v1557, 2147483648
  %v1616 = vor.u32 1.1754944e-38, %v1615
  %v1617 = vsel %vm1614, %v1616, %v1612
  %v1618 = vmul.f32 1.0, %v1617
  %v1619 = vrcp.pop %v1558
  %v1620 = vmul.f32 %v1558, %v1619
  %v1621 = vsub.f32 1.0, %v1620
  %v1622 = vmul.f32 %v1619, %v1621
  %v1623 = vadd.f32 %v1619, %v1622
  %vm1624 = vweird.f32 %v1558
  %vm1625 = vweird.f32 %v1619
  %vm1626 = vmor %vm1624, %vm1625
  %v1627 = vsel %vm1626, %v1619, %v1623
  %v1628 = vand.u32 2147483647, %v1558
  %vm1629 = vcmp.eq.f32.partialorder %v1628, 8.507059e+37
  %v1630 = vand.u32 %v1558, 2147483648
  %v1631 = vor.u32 1.1754944e-38, %v1630
  %v1632 = vsel %vm1629, %v1631, %v1627
  %v1633 = vmul.f32 1.0, %v1632
  %v1634 = vtanh.pop %v1365
  %v1635 = vtanh.pop %v1408
  %v1636 = vtanh.pop %v1451
  %v1637 = vtanh.pop %v1494
  %v1638 = vtanh.pop %v1537
  %v1639 = vsub.f32 1.0, %v1573
  %v1640 = vsub.f32 1.0, %v1588
  %v1641 = vsub.f32 1.0, %v1603
  %v1642 = vsub.f32 1.0, %v1618
  %v1643 = vsub.f32 1.0, %v1633
  %v1644 = vmul.f32 %v1639, %v1308
  %v1645 = vmul.f32 %v1640, %v1309
  %v1646 = vmul.f32 %v1641, %v1310
  %v1647 = vmul.f32 %v1642, %v1311
  %v1648 = vmul.f32 %v1643, %v1312
  %v1649 = vmul.f32 %v1573, %v1634
  %v1650 = vmul.f32 %v1588, %v1635
  %v1651 = vmul.f32 %v1603, %v1636
  %v1652 = vmul.f32 %v1618, %v1637
  %v1653 = vmul.f32 %v1633, %v1638
  %v1654 = vadd.f32 %v1644, %v1649
  %v1655 = vadd.f32 %v1645, %v1650
  %v1656 = vadd.f32 %v1646, %v1651
  %v1657 = vadd.f32 %v1647, %v1652
  %v1658 = vadd.f32 %v1648, %v1653
  %v1659 = vtanh.pop %v1654
  %v1660 = vtanh.pop %v1655
  %v1661 = vtanh.pop %v1656
  %v1662 = vtanh.pop %v1657
  %v1663 = vtanh.pop %v1658
  %1669 = vrot.lane.b32.xlu0 %v1573, 64
  %v1670 = vpop.permute.xlu0 %1669
  %1671 = vrot.lane.b32.xlu0 %v1588, 64
  %v1672 = vpop.permute.xlu0 %1671
  %1673 = vrot.lane.b32.xlu0 %v1603, 64
  %v1674 = vpop.permute.xlu0 %1673
  %1675 = vrot.lane.b32.xlu0 %v1618, 64
  %v1676 = vpop.permute.xlu0 %1675
  %1677 = vrot.lane.b32.xlu0 %v1633, 64
  %v1678 = vpop.permute.xlu0 %1677
  %v1684 = vmul.f32 %v1659, %v1670
  %v1685 = vmul.f32 %v1660, %v1672
  %v1686 = vmul.f32 %v1661, %v1674
  %v1687 = vmul.f32 %v1662, %v1676
  %v1688 = vmul.f32 %v1663, %v1678
  %v1694 = vrot.slane %v1684, 4
  %v1695 = vrot.slane %v1685, 4
  %v1696 = vrot.slane %v1686, 4
  %v1697 = vrot.slane %v1687, 4
  %v1698 = vrot.slane %v1688, 4
  %v1704 = vsel %vm500, %v1694, %v1694
  %v1705 = vsel %vm500, %v1695, %v1695
  %v1706 = vsel %vm500, %v1696, %v1696
  %v1707 = vsel %vm500, %v1697, %v1697
  %v1708 = vsel %vm500, %v1698, %v1698
  %v1709 = vsel %vm103, %v1684, %v1704
  %v1710 = vsel %vm103, %v1685, %v1705
  %v1711 = vsel %vm103, %v1686, %v1706
  %v1712 = vsel %vm103, %v1687, %v1707
  %v1713 = vsel %vm103, %v1688, %v1708
  %s1714 = scalar_lea.vmem %s0, 320
  %v1715 = vld [vmem:[%s1714] sm:$0xff]
  %v1716 = vld [vmem:[%s1714 + $0x8] sm:$0xff]
  %v1717 = vld [vmem:[%s1714 + $0x10] sm:$0xff]
  %v1718 = vld [vmem:[%s1714 + $0x18] sm:$0xff]
  %v1719 = vld [vmem:[%s1714 + $0x20] sm:$0xff]
  %v1720 = vld [vmem:[%s1714 + $0x28] sm:$0xff]
  %v1721 = vld [vmem:[%s1714 + $0x30] sm:$0xff]
  %v1722 = vld [vmem:[%s1714 + $0x38] sm:$0xff]
  %v1723 = vld [vmem:[%s1714 + $0x40] sm:$0xff]
  %v1724 = vld [vmem:[%s1714 + $0x48] sm:$0xff]
  %v1726 = vsel %vm119, %v1709, 0
  %1728 = vmatpush.msra.mxu0 0.0
  %1729 = vmatpush.msra.mxu0 0.0
  %1730 = vmatpush.msra.mxu0 0.0
  %1731 = vmatpush.msra.mxu0 0.0
  %1732 = vmatpush.msra.mxu0 0.0
  %1733 = vmatpush.msra.mxu0 0.0
  %1734 = vmatpush.msra.mxu0 0.0
  %1735 = vmatpush.msra.mxu0 0.0
  %1736 = vmatpush.msra.mxu0 %v35
  %1737 = vmatpush.msra.mxu0 %v33
  %1738 = vmatpush.msra.mxu0 %v31
  %1739 = vmatpush.msra.mxu0 %v29
  %1740 = vmatpush.msra.mxu0 %v27
  %1741 = vmatpush.msra.mxu0 %v25
  %1742 = vmatpush.msra.mxu0 %v23
  %1743 = vmatpush.msra.mxu0 %v21
  %1744 = vmatmul.f32.gmra.mxu0 %v1726
  %v1745 = vpop.f32.mrf.mxu0
  %v1746 = vadd.f32 %v1715, %v1745
  %1747 = vdwg.mxu0
  %1748 = vmatpush.msra.mxu0 0.0
  %1749 = vmatpush.msra.mxu0 0.0
  %1750 = vmatpush.msra.mxu0 0.0
  %1751 = vmatpush.msra.mxu0 0.0
  %1752 = vmatpush.msra.mxu0 0.0
  %1753 = vmatpush.msra.mxu0 0.0
  %1754 = vmatpush.msra.mxu0 0.0
  %1755 = vmatpush.msra.mxu0 0.0
  %1756 = vmatpush.msra.mxu0 %v36
  %1757 = vmatpush.msra.mxu0 %v34
  %1758 = vmatpush.msra.mxu0 %v32
  %1759 = vmatpush.msra.mxu0 %v30
  %1760 = vmatpush.msra.mxu0 %v28
  %1761 = vmatpush.msra.mxu0 %v26
  %1762 = vmatpush.msra.mxu0 %v24
  %1763 = vmatpush.msra.mxu0 %v22
  %1764 = vmatmul.f32.gmra.mxu0 %v1726
  %v1765 = vpop.f32.mrf.mxu0
  %v1766 = vadd.f32 %v1716, %v1765
  %1767 = vdwg.mxu0
  %v1769 = vsel %vm119, %v1710, 0
  %1771 = vmatpush.msra.mxu0 0.0
  %1772 = vmatpush.msra.mxu0 0.0
  %1773 = vmatpush.msra.mxu0 0.0
  %1774 = vmatpush.msra.mxu0 0.0
  %1775 = vmatpush.msra.mxu0 0.0
  %1776 = vmatpush.msra.mxu0 0.0
  %1777 = vmatpush.msra.mxu0 0.0
  %1778 = vmatpush.msra.mxu0 0.0
  %1779 = vmatpush.msra.mxu0 %v51
  %1780 = vmatpush.msra.mxu0 %v49
  %1781 = vmatpush.msra.mxu0 %v47
  %1782 = vmatpush.msra.mxu0 %v45
  %1783 = vmatpush.msra.mxu0 %v43
  %1784 = vmatpush.msra.mxu0 %v41
  %1785 = vmatpush.msra.mxu0 %v39
  %1786 = vmatpush.msra.mxu0 %v37
  %1787 = vmatmul.f32.gmra.mxu0 %v1769
  %v1788 = vpop.f32.mrf.mxu0
  %v1789 = vadd.f32 %v1717, %v1788
  %1790 = vdwg.mxu0
  %1791 = vmatpush.msra.mxu0 0.0
  %1792 = vmatpush.msra.mxu0 0.0
  %1793 = vmatpush.msra.mxu0 0.0
  %1794 = vmatpush.msra.mxu0 0.0
  %1795 = vmatpush.msra.mxu0 0.0
  %1796 = vmatpush.msra.mxu0 0.0
  %1797 = vmatpush.msra.mxu0 0.0
  %1798 = vmatpush.msra.mxu0 0.0
  %1799 = vmatpush.msra.mxu0 %v52
  %1800 = vmatpush.msra.mxu0 %v50
  %1801 = vmatpush.msra.mxu0 %v48
  %1802 = vmatpush.msra.mxu0 %v46
  %1803 = vmatpush.msra.mxu0 %v44
  %1804 = vmatpush.msra.mxu0 %v42
  %1805 = vmatpush.msra.mxu0 %v40
  %1806 = vmatpush.msra.mxu0 %v38
  %1807 = vmatmul.f32.gmra.mxu0 %v1769
  %v1808 = vpop.f32.mrf.mxu0
  %v1809 = vadd.f32 %v1718, %v1808
  %1810 = vdwg.mxu0
  %v1812 = vsel %vm119, %v1711, 0
  %1814 = vmatpush.msra.mxu0 0.0
  %1815 = vmatpush.msra.mxu0 0.0
  %1816 = vmatpush.msra.mxu0 0.0
  %1817 = vmatpush.msra.mxu0 0.0
  %1818 = vmatpush.msra.mxu0 0.0
  %1819 = vmatpush.msra.mxu0 0.0
  %1820 = vmatpush.msra.mxu0 0.0
  %1821 = vmatpush.msra.mxu0 0.0
  %1822 = vmatpush.msra.mxu0 %v67
  %1823 = vmatpush.msra.mxu0 %v65
  %1824 = vmatpush.msra.mxu0 %v63
  %1825 = vmatpush.msra.mxu0 %v61
  %1826 = vmatpush.msra.mxu0 %v59
  %1827 = vmatpush.msra.mxu0 %v57
  %1828 = vmatpush.msra.mxu0 %v55
  %1829 = vmatpush.msra.mxu0 %v53
  %1830 = vmatmul.f32.gmra.mxu0 %v1812
  %v1831 = vpop.f32.mrf.mxu0
  %v1832 = vadd.f32 %v1719, %v1831
  %1833 = vdwg.mxu0
  %1834 = vmatpush.msra.mxu0 0.0
  %1835 = vmatpush.msra.mxu0 0.0
  %1836 = vmatpush.msra.mxu0 0.0
  %1837 = vmatpush.msra.mxu0 0.0
  %1838 = vmatpush.msra.mxu0 0.0
  %1839 = vmatpush.msra.mxu0 0.0
  %1840 = vmatpush.msra.mxu0 0.0
  %1841 = vmatpush.msra.mxu0 0.0
  %1842 = vmatpush.msra.mxu0 %v68
  %1843 = vmatpush.msra.mxu0 %v66
  %1844 = vmatpush.msra.mxu0 %v64
  %1845 = vmatpush.msra.mxu0 %v62
  %1846 = vmatpush.msra.mxu0 %v60
  %1847 = vmatpush.msra.mxu0 %v58
  %1848 = vmatpush.msra.mxu0 %v56
  %1849 = vmatpush.msra.mxu0 %v54
  %1850 = vmatmul.f32.gmra.mxu0 %v1812
  %v1851 = vpop.f32.mrf.mxu0
  %v1852 = vadd.f32 %v1720, %v1851
  %1853 = vdwg.mxu0
  %v1855 = vsel %vm119, %v1712, 0
  %1857 = vmatpush.msra.mxu0 0.0
  %1858 = vmatpush.msra.mxu0 0.0
  %1859 = vmatpush.msra.mxu0 0.0
  %1860 = vmatpush.msra.mxu0 0.0
  %1861 = vmatpush.msra.mxu0 0.0
  %1862 = vmatpush.msra.mxu0 0.0
  %1863 = vmatpush.msra.mxu0 0.0
  %1864 = vmatpush.msra.mxu0 0.0
  %1865 = vmatpush.msra.mxu0 %v83
  %1866 = vmatpush.msra.mxu0 %v81
  %1867 = vmatpush.msra.mxu0 %v79
  %1868 = vmatpush.msra.mxu0 %v77
  %1869 = vmatpush.msra.mxu0 %v75
  %1870 = vmatpush.msra.mxu0 %v73
  %1871 = vmatpush.msra.mxu0 %v71
  %1872 = vmatpush.msra.mxu0 %v69
  %1873 = vmatmul.f32.gmra.mxu0 %v1855
  %v1874 = vpop.f32.mrf.mxu0
  %v1875 = vadd.f32 %v1721, %v1874
  %1876 = vdwg.mxu0
  %1877 = vmatpush.msra.mxu0 0.0
  %1878 = vmatpush.msra.mxu0 0.0
  %1879 = vmatpush.msra.mxu0 0.0
  %1880 = vmatpush.msra.mxu0 0.0
  %1881 = vmatpush.msra.mxu0 0.0
  %1882 = vmatpush.msra.mxu0 0.0
  %1883 = vmatpush.msra.mxu0 0.0
  %1884 = vmatpush.msra.mxu0 0.0
  %1885 = vmatpush.msra.mxu0 %v84
  %1886 = vmatpush.msra.mxu0 %v82
  %1887 = vmatpush.msra.mxu0 %v80
  %1888 = vmatpush.msra.mxu0 %v78
  %1889 = vmatpush.msra.mxu0 %v76
  %1890 = vmatpush.msra.mxu0 %v74
  %1891 = vmatpush.msra.mxu0 %v72
  %1892 = vmatpush.msra.mxu0 %v70
  %1893 = vmatmul.f32.gmra.mxu0 %v1855
  %v1894 = vpop.f32.mrf.mxu0
  %v1895 = vadd.f32 %v1722, %v1894
  %1896 = vdwg.mxu0
  %v1898 = vsel %vm119, %v1713, 0
  %1900 = vmatpush.msra.mxu0 0.0
  %1901 = vmatpush.msra.mxu0 0.0
  %1902 = vmatpush.msra.mxu0 0.0
  %1903 = vmatpush.msra.mxu0 0.0
  %1904 = vmatpush.msra.mxu0 0.0
  %1905 = vmatpush.msra.mxu0 0.0
  %1906 = vmatpush.msra.mxu0 0.0
  %1907 = vmatpush.msra.mxu0 0.0
  %1908 = vmatpush.msra.mxu0 %v99
  %1909 = vmatpush.msra.mxu0 %v97
  %1910 = vmatpush.msra.mxu0 %v95
  %1911 = vmatpush.msra.mxu0 %v93
  %1912 = vmatpush.msra.mxu0 %v91
  %1913 = vmatpush.msra.mxu0 %v89
  %1914 = vmatpush.msra.mxu0 %v87
  %1915 = vmatpush.msra.mxu0 %v85
  %1916 = vmatmul.f32.gmra.mxu0 %v1898
  %v1917 = vpop.f32.mrf.mxu0
  %v1918 = vadd.f32 %v1723, %v1917
  %1919 = vdwg.mxu0
  %1920 = vmatpush.msra.mxu0 0.0
  %1921 = vmatpush.msra.mxu0 0.0
  %1922 = vmatpush.msra.mxu0 0.0
  %1923 = vmatpush.msra.mxu0 0.0
  %1924 = vmatpush.msra.mxu0 0.0
  %1925 = vmatpush.msra.mxu0 0.0
  %1926 = vmatpush.msra.mxu0 0.0
  %1927 = vmatpush.msra.mxu0 0.0
  %1928 = vmatpush.msra.mxu0 %v100
  %1929 = vmatpush.msra.mxu0 %v98
  %1930 = vmatpush.msra.mxu0 %v96
  %1931 = vmatpush.msra.mxu0 %v94
  %1932 = vmatpush.msra.mxu0 %v92
  %1933 = vmatpush.msra.mxu0 %v90
  %1934 = vmatpush.msra.mxu0 %v88
  %1935 = vmatpush.msra.mxu0 %v86
  %1936 = vmatmul.f32.gmra.mxu0 %v1898
  %v1937 = vpop.f32.mrf.mxu0
  %v1938 = vadd.f32 %v1724, %v1937
  %1939 = vdwg.mxu0
  %v1940 = vxor.u32 %v1746, 2147483648
  %v1941 = vxor.u32 %v1789, 2147483648
  %v1942 = vxor.u32 %v1832, 2147483648
  %v1943 = vxor.u32 %v1875, 2147483648
  %v1944 = vxor.u32 %v1918, 2147483648
  %v1945 = vmul.f32 %v1940, 1.442695
  %v1946 = vpow.pop %v1945
  %v1947 = vmul.f32 %v1941, 1.442695
  %v1948 = vpow.pop %v1947
  %v1949 = vmul.f32 %v1942, 1.442695
  %v1950 = vpow.pop %v1949
  %v1951 = vmul.f32 %v1943, 1.442695
  %v1952 = vpow.pop %v1951
  %v1953 = vmul.f32 %v1944, 1.442695
  %v1954 = vpow.pop %v1953
  %v1955 = vadd.f32 %v1946, 1.0
  %v1956 = vadd.f32 %v1948, 1.0
  %v1957 = vadd.f32 %v1950, 1.0
  %v1958 = vadd.f32 %v1952, 1.0
  %v1959 = vadd.f32 %v1954, 1.0
  %v1960 = vrcp.pop %v1955
  %v1961 = vmul.f32 %v1955, %v1960
  %v1962 = vsub.f32 1.0, %v1961
  %v1963 = vmul.f32 %v1960, %v1962
  %v1964 = vadd.f32 %v1960, %v1963
  %vm1965 = vweird.f32 %v1955
  %vm1966 = vweird.f32 %v1960
  %vm1967 = vmor %vm1965, %vm1966
  %v1968 = vsel %vm1967, %v1960, %v1964
  %v1969 = vand.u32 2147483647, %v1955
  %vm1970 = vcmp.eq.f32.partialorder %v1969, 8.507059e+37
  %v1971 = vand.u32 %v1955, 2147483648
  %v1972 = vor.u32 1.1754944e-38, %v1971
  %v1973 = vsel %vm1970, %v1972, %v1968
  %v1974 = vmul.f32 1.0, %v1973
  %v1975 = vrcp.pop %v1956
  %v1976 = vmul.f32 %v1956, %v1975
  %v1977 = vsub.f32 1.0, %v1976
  %v1978 = vmul.f32 %v1975, %v1977
  %v1979 = vadd.f32 %v1975, %v1978
  %vm1980 = vweird.f32 %v1956
  %vm1981 = vweird.f32 %v1975
  %vm1982 = vmor %vm1980, %vm1981
  %v1983 = vsel %vm1982, %v1975, %v1979
  %v1984 = vand.u32 2147483647, %v1956
  %vm1985 = vcmp.eq.f32.partialorder %v1984, 8.507059e+37
  %v1986 = vand.u32 %v1956, 2147483648
  %v1987 = vor.u32 1.1754944e-38, %v1986
  %v1988 = vsel %vm1985, %v1987, %v1983
  %v1989 = vmul.f32 1.0, %v1988
  %v1990 = vrcp.pop %v1957
  %v1991 = vmul.f32 %v1957, %v1990
  %v1992 = vsub.f32 1.0, %v1991
  %v1993 = vmul.f32 %v1990, %v1992
  %v1994 = vadd.f32 %v1990, %v1993
  %vm1995 = vweird.f32 %v1957
  %vm1996 = vweird.f32 %v1990
  %vm1997 = vmor %vm1995, %vm1996
  %v1998 = vsel %vm1997, %v1990, %v1994
  %v1999 = vand.u32 2147483647, %v1957
  %vm2000 = vcmp.eq.f32.partialorder %v1999, 8.507059e+37
  %v2001 = vand.u32 %v1957, 2147483648
  %v2002 = vor.u32 1.1754944e-38, %v2001
  %v2003 = vsel %vm2000, %v2002, %v1998
  %v2004 = vmul.f32 1.0, %v2003
  %v2005 = vrcp.pop %v1958
  %v2006 = vmul.f32 %v1958, %v2005
  %v2007 = vsub.f32 1.0, %v2006
  %v2008 = vmul.f32 %v2005, %v2007
  %v2009 = vadd.f32 %v2005, %v2008
  %vm2010 = vweird.f32 %v1958
  %vm2011 = vweird.f32 %v2005
  %vm2012 = vmor %vm2010, %vm2011
  %v2013 = vsel %vm2012, %v2005, %v2009
  %v2014 = vand.u32 2147483647, %v1958
  %vm2015 = vcmp.eq.f32.partialorder %v2014, 8.507059e+37
  %v2016 = vand.u32 %v1958, 2147483648
  %v2017 = vor.u32 1.1754944e-38, %v2016
  %v2018 = vsel %vm2015, %v2017, %v2013
  %v2019 = vmul.f32 1.0, %v2018
  %v2020 = vrcp.pop %v1959
  %v2021 = vmul.f32 %v1959, %v2020
  %v2022 = vsub.f32 1.0, %v2021
  %v2023 = vmul.f32 %v2020, %v2022
  %v2024 = vadd.f32 %v2020, %v2023
  %vm2025 = vweird.f32 %v1959
  %vm2026 = vweird.f32 %v2020
  %vm2027 = vmor %vm2025, %vm2026
  %v2028 = vsel %vm2027, %v2020, %v2024
  %v2029 = vand.u32 2147483647, %v1959
  %vm2030 = vcmp.eq.f32.partialorder %v2029, 8.507059e+37
  %v2031 = vand.u32 %v1959, 2147483648
  %v2032 = vor.u32 1.1754944e-38, %v2031
  %v2033 = vsel %vm2030, %v2032, %v2028
  %v2034 = vmul.f32 1.0, %v2033
  %v2035 = vtanh.pop %v1766
  %v2036 = vtanh.pop %v1809
  %v2037 = vtanh.pop %v1852
  %v2038 = vtanh.pop %v1895
  %v2039 = vtanh.pop %v1938
  %v2040 = vsub.f32 1.0, %v1974
  %v2041 = vsub.f32 1.0, %v1989
  %v2042 = vsub.f32 1.0, %v2004
  %v2043 = vsub.f32 1.0, %v2019
  %v2044 = vsub.f32 1.0, %v2034
  %v2045 = vmul.f32 %v2040, %v1709
  %v2046 = vmul.f32 %v2041, %v1710
  %v2047 = vmul.f32 %v2042, %v1711
  %v2048 = vmul.f32 %v2043, %v1712
  %v2049 = vmul.f32 %v2044, %v1713
  %v2050 = vmul.f32 %v1974, %v2035
  %v2051 = vmul.f32 %v1989, %v2036
  %v2052 = vmul.f32 %v2004, %v2037
  %v2053 = vmul.f32 %v2019, %v2038
  %v2054 = vmul.f32 %v2034, %v2039
  %v2055 = vadd.f32 %v2045, %v2050
  %v2056 = vadd.f32 %v2046, %v2051
  %v2057 = vadd.f32 %v2047, %v2052
  %v2058 = vadd.f32 %v2048, %v2053
  %v2059 = vadd.f32 %v2049, %v2054
  %v2060 = vtanh.pop %v2055
  %v2061 = vtanh.pop %v2056
  %v2062 = vtanh.pop %v2057
  %v2063 = vtanh.pop %v2058
  %v2064 = vtanh.pop %v2059
  %2070 = vrot.lane.b32.xlu0 %v1974, 64
  %v2071 = vpop.permute.xlu0 %2070
  %2072 = vrot.lane.b32.xlu0 %v1989, 64
  %v2073 = vpop.permute.xlu0 %2072
  %2074 = vrot.lane.b32.xlu0 %v2004, 64
  %v2075 = vpop.permute.xlu0 %2074
  %2076 = vrot.lane.b32.xlu0 %v2019, 64
  %v2077 = vpop.permute.xlu0 %2076
  %2078 = vrot.lane.b32.xlu0 %v2034, 64
  %v2079 = vpop.permute.xlu0 %2078
  %v2085 = vmul.f32 %v2060, %v2071
  %v2086 = vmul.f32 %v2061, %v2073
  %v2087 = vmul.f32 %v2062, %v2075
  %v2088 = vmul.f32 %v2063, %v2077
  %v2089 = vmul.f32 %v2064, %v2079
  %v2095 = vrot.slane %v2085, 4
  %v2096 = vrot.slane %v2086, 4
  %v2097 = vrot.slane %v2087, 4
  %v2098 = vrot.slane %v2088, 4
  %v2099 = vrot.slane %v2089, 4
  %v2105 = vsel %vm500, %v2095, %v2095
  %v2106 = vsel %vm500, %v2096, %v2096
  %v2107 = vsel %vm500, %v2097, %v2097
  %v2108 = vsel %vm500, %v2098, %v2098
  %v2109 = vsel %vm500, %v2099, %v2099
  %v2110 = vsel %vm103, %v2085, %v2105
  %v2111 = vsel %vm103, %v2086, %v2106
  %v2112 = vsel %vm103, %v2087, %v2107
  %v2113 = vsel %vm103, %v2088, %v2108
  %v2114 = vsel %vm103, %v2089, %v2109
  %2115 = vst.msk [vmem:[#allocation2] sm:$0xff] %vm119, %v2110
  %2116 = vst.msk [vmem:[#allocation2 + $0x8] sm:$0xff] %vm119, %v2111
  %2117 = vst.msk [vmem:[#allocation2 + $0x10] sm:$0xff] %vm119, %v2112
  %2118 = vst.msk [vmem:[#allocation2 + $0x18] sm:$0xff] %vm119, %v2113
  %2119 = vst.msk [vmem:[#allocation2 + $0x20] sm:$0xff] %vm119, %v2114
  // Predicated region
  $region14: #{pn_witran_forward.1} parent=0 // pred_check
    %p2120 = pneg %p11
  $region15: #{pn_witran_forward.1} parent=0 // pred_check_branch
    %2122 = sbr.rel (%p2120) target = $region17
  $region16: #{pn_witran_forward.1} parent=0 // pred_region
    %v2128 = vrot.slane %v2110, 4
    %v2129 = vrot.slane %v2111, 4
    %v2130 = vrot.slane %v2112, 4
    %v2131 = vrot.slane %v2113, 4
    %v2132 = vrot.slane %v2114, 4
    %v2138 = vsel %vm500, %v2128, %v2128
    %v2139 = vsel %vm500, %v2129, %v2129
    %v2140 = vsel %vm500, %v2130, %v2130
    %v2141 = vsel %vm500, %v2131, %v2131
    %v2142 = vsel %vm500, %v2132, %v2132
    %v2143 = vsel %vm103, %v2085, %v2138
    %v2144 = vsel %vm103, %v2086, %v2139
    %v2145 = vsel %vm103, %v2087, %v2140
    %v2146 = vsel %vm103, %v2088, %v2141
    %v2147 = vsel %vm103, %v2089, %v2142
    %2148 = vst.msk [vmem:[%s2] sm:$0xff] %vm119, %v2143
    %2149 = vst.msk [vmem:[%s2 + $0x8] sm:$0xff] %vm119, %v2144
    %2150 = vst.msk [vmem:[%s2 + $0x10] sm:$0xff] %vm119, %v2145
    %2151 = vst.msk [vmem:[%s2 + $0x18] sm:$0xff] %vm119, %v2146
    %2152 = vst.msk [vmem:[%s2 + $0x20] sm:$0xff] %vm119, %v2147
  $region17: #{pn_witran_forward.1} parent=0 // pred_fallthru
    _
  // Predicated region
  $region18: #{pn_witran_forward.1} parent=0 // pred_check
    _
  $region19: #{pn_witran_forward.1} parent=0 // pred_check_branch
    %2154 = sbr.rel (0) target = $region21
  $region20: #{pn_witran_forward.1} parent=0 // pred_region
    _
  $region21: #{pn_witran_forward.1} parent=0 // pred_fallthru
    _
  // Predicated region
  $region22: #{pn_witran_forward.1} parent=0 // pred_check
    _
  $region23: #{pn_witran_forward.1} parent=0 // pred_check_branch
    %2156 = sbr.rel (0) target = $region25
  $region24: #{pn_witran_forward.1} parent=0 // pred_region
    _
  $region25: #{pn_witran_forward.1} parent=0 // pred_fallthru
    _

</llo_original>
